<compile_context>
chip_gen: v7x
topology: tpu7x:2x2x1
jax: 0.10.0
libtpu: 0.0.40
codegen_flags: <defaults>
</compile_context>

<pallas_src>
import jax
import jax.numpy as jnp
from jax.experimental import pallas as pl
from jax.experimental.pallas import tpu as pltpu


def _round_up(x, m):
    return ((x + m - 1) // m) * m


def _cdiv(a, b):
    return -(-a // b)


def _chip_kind():
    try:
        return jax.devices()[0].device_kind.lower()
    except Exception:
        return ""


def _vmem_budget_bytes():
    kind = _chip_kind()
    cap = (64 << 20) if "v7" in kind else (128 << 20)   # v7x: 64 MiB / TC
    return (cap * 3) // 4                               # 48 MiB v7x, 96 MiB v5e/v6e


def _output_dtype():
    kind = _chip_kind()
    if "v6" in kind or "v7" in kind:
        return jnp.bfloat16     # native bf16 VPU/EUP; halves output writeback
    return jnp.float32          # v5e / older: keep the epilogue + store in f32


def _decoder_kernel(zy_ref,                      # (TB, KP)            bf16
                    w_in_ref, b_in_ref,          # (KP, 2*HP) bf16 / (1, 2*HP) f32
                    w_dec_ref, b_dec_ref,        # (2*HP, HP) bf16 / (1, HP) f32
                    w_dec2_ref, b_dec2_ref,      # (HP, HP)   bf16 / (1, HP) f32
                    w_out_ref, b_out_ref,        # (HP, TN)   bf16 / (1, TN) f32
                    o_ref):                      # (TB, TN)   out_dtype
    # fused fc_latent + fc_lbl_dec (block-diagonal weight on cat(z, onehot(y))) + ReLU
    h = jnp.dot(zy_ref[...], w_in_ref[...], preferred_element_type=jnp.float32)
    h = jnp.maximum(h + b_in_ref[...], 0.0)

    # decoder on cat(h_z, h_y) + ReLU
    h = jnp.dot(h.astype(w_dec_ref.dtype), w_dec_ref[...],
                preferred_element_type=jnp.float32)
    h = jnp.maximum(h + b_dec_ref[...], 0.0)

    # decoder2 + ReLU
    h = jnp.dot(h.astype(w_dec2_ref.dtype), w_dec2_ref[...],
                preferred_element_type=jnp.float32)
    h = jnp.maximum(h + b_dec2_ref[...], 0.0)

    # fc_dec (flat-tiled) + sigmoid; store in the (possibly bf16) output dtype
    logits = jnp.dot(h.astype(w_out_ref.dtype), w_out_ref[...],
                     preferred_element_type=jnp.float32)
    o_ref[...] = jax.nn.sigmoid(logits + b_out_ref[...]).astype(o_ref.dtype)


def make_decoder_params(key, img_size, label_size, latent_size, hidden_size):
    """Deterministic synthetic parameters. Weights are [in, out]; biases [1, out]."""
    C, H, W = img_size
    flat = C * H * W
    ks = jax.random.split(key, 10)

    def w(k, shape, fan_in):
        return (jax.random.normal(k, shape, dtype=jnp.float32)
                * (1.0 / jnp.sqrt(jnp.float32(fan_in))))

    return dict(
        w_lat=w(ks[0], (latent_size, hidden_size), latent_size),
        b_lat=w(ks[1], (1, hidden_size), latent_size),
        w_lbl=w(ks[2], (label_size, hidden_size), label_size),
        b_lbl=w(ks[3], (1, hidden_size), label_size),
        w_dec=w(ks[4], (2 * hidden_size, hidden_size), 2 * hidden_size),
        b_dec=w(ks[5], (1, hidden_size), 2 * hidden_size),
        w_dec2=w(ks[6], (hidden_size, hidden_size), hidden_size),
        b_dec2=w(ks[7], (1, hidden_size), hidden_size),
        w_out=w(ks[8], (hidden_size, flat), hidden_size),
        b_out=w(ks[9], (1, flat), hidden_size),
    )


def decoder_forward(z, y, params, img_size, label_size, latent_size, hidden_size):
    """Runs the tiled Pallas decoder kernel. Returns NCHW (B, C, H, W) float32."""
    B = z.shape[0]
    C, H, W = img_size
    flat = C * H * W
    hs = hidden_size

    # ---------------- tile geometry (lane/sublane aligned) ----------------
    # 128-lane alignment for the hidden width: going to 256 would only add
    # zero rows to the dominant hp x flat matmul for small hidden sizes.
    hp = _round_up(hs, 128)
    TB_MAX = 256
    if B <= TB_MAX:
        TB = _round_up(max(B, 1), 16)              # 16: bf16 sublane packing
    else:
        # adaptive batch tile -> minimal padding waste when B isn't a multiple
        TB = _round_up(_cdiv(B, _cdiv(B, TB_MAX)), 16)
    B_pad = _round_up(B, TB)
    nb = B_pad // TB

    flat_pad = _round_up(flat, 128)
    out_dtype = _output_dtype()
    out_bytes = jnp.dtype(out_dtype).itemsize
    budget = _vmem_budget_bytes()

    k_in = latent_size + label_size
    k_in_pad = _round_up(k_in, 128)                # lane-dense zy / w_in blocks

    # constant (single-buffered) weight/bias VMEM footprint
    const_bytes = (k_in_pad * 2 * hp * 2 + 2 * hp * 4
                   + 2 * hp * hp * 2 + hp * 4
                   + hp * hp * 2 + hp * 4)

    def _fits(tn, wout_bufs):
        use = (const_bytes
               + 2 * TB * k_in_pad * 2                   # zy (bf16, double-buffered)
               + wout_bufs * (hp * tn * 2 + tn * 4)      # w_out + b_out
               + 2 * TB * tn * out_bytes)                # output tile (double-buffered)
        return use <= budget

    if _fits(flat_pad, 1):
        TN = flat_pad                 # w_out fully VMEM-resident, nj == 1
    else:
        TN = 128
        for cand in (4096, 2048, 1024, 512, 256):
            if cand < flat_pad and flat_pad % cand == 0 and _fits(cand, 2):
                TN = cand
                break
    nj = flat_pad // TN

    # ---------------- inputs: one-hot labels, fused (z, y) K dim ----------
    if y.ndim == 1 or y.shape[-1] != label_size:
        y = jax.nn.one_hot(y.reshape(B), label_size, dtype=jnp.float32)
    zy = jnp.concatenate([z.astype(jnp.float32), y.astype(jnp.float32)], axis=1)
    zy = jnp.pad(zy, ((0, B_pad - B), (0, k_in_pad - k_in)))
    zy = zy.astype(jnp.bfloat16)       # pre-cast: halves activation DMA

    # ---------------- pack / pad weights (bf16) and biases (f32) ----------
    f32, bf16 = jnp.float32, jnp.bfloat16

    # fused fc_latent / fc_lbl_dec as a block-diagonal weight:
    # cols [0:hp) hold the h_z half, cols [hp:2hp) hold the h_y half.
    w_in = jnp.zeros((k_in_pad, 2 * hp), f32)
    w_in = w_in.at[:latent_size, :hs].set(params["w_lat"])
    w_in = w_in.at[latent_size:k_in, hp:hp + hs].set(params["w_lbl"])
    b_in = jnp.zeros((1, 2 * hp), f32)
    b_in = b_in.at[:, :hs].set(params["b_lat"])
    b_in = b_in.at[:, hp:hp + hs].set(params["b_lbl"])

    # decoder: rows [0:hs) take the h_z half, rows [hp:hp+hs) take the h_y half
    # (matches torch.cat((h_z, h_y), dim=1) ordering).
    w_dec = jnp.zeros((2 * hp, hp), f32)
    w_dec = w_dec.at[:hs, :hs].set(params["w_dec"][:hs])
    w_dec = w_dec.at[hp:hp + hs, :hs].set(params["w_dec"][hs:])
    b_dec = jnp.zeros((1, hp), f32).at[:, :hs].set(params["b_dec"])

    w_dec2 = jnp.zeros((hp, hp), f32).at[:hs, :hs].set(params["w_dec2"])
    b_dec2 = jnp.zeros((1, hp), f32).at[:, :hs].set(params["b_dec2"])

    w_out = jnp.zeros((hp, flat_pad), f32).at[:hs, :flat].set(params["w_out"])
    b_out = jnp.zeros((1, flat_pad), f32).at[:, :flat].set(params["b_out"])

    w_in, w_dec, w_dec2, w_out = (w_in.astype(bf16), w_dec.astype(bf16),
                                  w_dec2.astype(bf16), w_out.astype(bf16))

    # ---------------- pallas call ------------------------------------------
    def _const_spec(shape, single):
        if single:
            # never-changing block: single-buffer to save VMEM
            return pl.BlockSpec(shape, lambda j, i: (0, 0),
                                pipeline_mode=pl.Buffered(1))
        return pl.BlockSpec(shape, lambda j, i: (0, 0))

    def _wout_spec(shape, single):
        imap = lambda j, i: (0, j)
        if nj == 1 and single:
            return pl.BlockSpec(shape, imap, pipeline_mode=pl.Buffered(1))
        return pl.BlockSpec(shape, imap)

    def _call(single_buffer_consts):
        grid_spec = pltpu.PrefetchScalarGridSpec(
            num_scalar_prefetch=0,
            # flat-outer, batch-inner: w_out is DMA'd once total (nj blocks),
            # never re-streamed per batch tile. No cross-step carry -> both
            # axes are independent ("parallel", usable by v7x megacore).
            grid=(nj, nb),
            in_specs=[
                pl.BlockSpec((TB, k_in_pad), lambda j, i: (i, 0)),   # zy tile
                _const_spec((k_in_pad, 2 * hp), single_buffer_consts),  # w_in
                _const_spec((1, 2 * hp), single_buffer_consts),         # b_in
                _const_spec((2 * hp, hp), single_buffer_consts),        # w_dec
                _const_spec((1, hp), single_buffer_consts),             # b_dec
                _const_spec((hp, hp), single_buffer_consts),            # w_dec2
                _const_spec((1, hp), single_buffer_consts),             # b_dec2
                _wout_spec((hp, TN), single_buffer_consts),             # w_out
                _wout_spec((1, TN), single_buffer_consts),              # b_out
            ],
            out_specs=pl.BlockSpec((TB, TN), lambda j, i: (i, j)),
        )
        return pl.pallas_call(
            _decoder_kernel,
            out_shape=jax.ShapeDtypeStruct((B_pad, flat_pad), out_dtype),
            grid_spec=grid_spec,
            compiler_params=pltpu.CompilerParams(
                dimension_semantics=("parallel", "parallel"),
                vmem_limit_bytes=budget,
            ),
        )(zy, w_in, b_in, w_dec, b_dec, w_dec2, b_dec2, w_out, b_out)

    try:
        out_flat = _call(True)
    except Exception:
        # Fallback if this Pallas build rejects pipeline_mode / Buffered(1).
        out_flat = _call(False)

    # Strip padding; layout NCHW to match PyTorch's x.view(B, *img_size).
    return out_flat[:B, :flat].astype(jnp.float32).reshape(B, C, H, W)


def decoder_reference(z, y, params, img_size, label_size):
    """Pure-JAX f32 reference of the PyTorch forward (for correctness check)."""
    B = z.shape[0]
    if y.ndim == 1 or y.shape[-1] != label_size:
        y = jax.nn.one_hot(y.reshape(B), label_size, dtype=jnp.float32)
    y = y.astype(jnp.float32)
    h_z = jax.nn.relu(z @ params["w_lat"] + params["b_lat"])
    h_y = jax.nn.relu(y @ params["w_lbl"] + params["b_lbl"])
    h = jnp.concatenate([h_z, h_y], axis=1)
    h = jax.nn.relu(h @ params["w_dec"] + params["b_dec"])
    h = jax.nn.relu(h @ params["w_dec2"] + params["b_dec2"])
    x = jax.nn.sigmoid(h @ params["w_out"] + params["b_out"])
    return x.reshape(B, *img_size)


if __name__ == "__main__":
    # Small, module-consistent shapes.
    img_size = (1, 16, 16)     # (C, H, W) -> flat_img_size = 256
    label_size = 4
    latent_size = 8
    hidden_size = 32
    batch = 2

    key = jax.random.PRNGKey(0)
    k_params, k_z, k_y = jax.random.split(key, 3)

    params = make_decoder_params(k_params, img_size, label_size,
                                 latent_size, hidden_size)

    z = jax.random.normal(k_z, (batch, latent_size), dtype=jnp.float32)
    # integer class labels -> exercises the one-hot branch of forward()
    y = jax.random.randint(k_y, (batch,), 0, label_size, dtype=jnp.int32)

    x = decoder_forward(z, y, params, img_size, label_size,
                        latent_size, hidden_size)
    x = jax.block_until_ready(x)

    assert x.shape == (batch,) + img_size, x.shape
    assert bool(jnp.all((x >= 0.0) & (x <= 1.0)))          # sigmoid range

    x_ref = decoder_reference(z, y, params, img_size, label_size)
    max_err = float(jnp.max(jnp.abs(x - x_ref)))
    # bf16 weights/activations (and bf16 output store on v6e/v7x) vs f32 ref.
    assert max_err < 3e-2, f"max abs err vs f32 reference: {max_err}"

    print("KERNEL_OK")
</pallas_src>

<mosaic_0001>
module attributes {stable_mosaic.version = 11 : i64} {
  func.func @_decoder_kernel(%arg0: i32, %arg1: i32, %arg2: memref<16x128xbf16, #tpu.memory_space<vmem>>, %arg3: memref<128x256xbf16, #tpu.memory_space<vmem>>, %arg4: memref<1x256xf32, #tpu.memory_space<vmem>>, %arg5: memref<256x128xbf16, #tpu.memory_space<vmem>>, %arg6: memref<1x128xf32, #tpu.memory_space<vmem>>, %arg7: memref<128x128xbf16, #tpu.memory_space<vmem>>, %arg8: memref<1x128xf32, #tpu.memory_space<vmem>>, %arg9: memref<128x256xbf16, #tpu.memory_space<vmem>>, %arg10: memref<1x256xf32, #tpu.memory_space<vmem>>, %arg11: memref<16x256xf32, #tpu.memory_space<vmem>>) attributes {dimension_semantics = [#tpu.dimension_semantics<parallel>, #tpu.dimension_semantics<parallel>], iteration_bounds = array<i64: 1, 1>, scalar_prefetch = 0 : i64, scratch_operands = 0 : i64, tpu.core_type = #tpu.core_type<tc>, window_params = [{transform_indices = @transform_0, window_bounds = array<i64: 16, 128>}, {pipeline_mode = #tpu.pipeline_mode<synchronous>, transform_indices = @transform_1, window_bounds = array<i64: 128, 256>}, {pipeline_mode = #tpu.pipeline_mode<synchronous>, transform_indices = @transform_2, window_bounds = array<i64: 1, 256>}, {pipeline_mode = #tpu.pipeline_mode<synchronous>, transform_indices = @transform_3, window_bounds = array<i64: 256, 128>}, {pipeline_mode = #tpu.pipeline_mode<synchronous>, transform_indices = @transform_4, window_bounds = array<i64: 1, 128>}, {pipeline_mode = #tpu.pipeline_mode<synchronous>, transform_indices = @transform_5, window_bounds = array<i64: 128, 128>}, {pipeline_mode = #tpu.pipeline_mode<synchronous>, transform_indices = @transform_6, window_bounds = array<i64: 1, 128>}, {pipeline_mode = #tpu.pipeline_mode<synchronous>, transform_indices = @transform_7, window_bounds = array<i64: 128, 256>}, {pipeline_mode = #tpu.pipeline_mode<synchronous>, transform_indices = @transform_8, window_bounds = array<i64: 1, 256>}, {transform_indices = @transform_9, window_bounds = array<i64: 16, 256>}]} {
    %c0 = arith.constant 0 : index
    %c0_0 = arith.constant 0 : index
    %0 = vector.load %arg2[%c0, %c0_0] : memref<16x128xbf16, #tpu.memory_space<vmem>>, vector<16x128xbf16>
    %c0_1 = arith.constant 0 : index
    %c0_2 = arith.constant 0 : index
    %1 = vector.load %arg3[%c0_1, %c0_2] : memref<128x256xbf16, #tpu.memory_space<vmem>>, vector<128x256xbf16>
    %cst = arith.constant dense<0.000000e+00> : vector<16x256xf32>
    %2 = tpu.matmul %0, %1, %cst {dimension_numbers = #tpu.dot_dimension_numbers<[1], [0], [0], [1], [0, 0, 1, 1], [], []>} : vector<16x128xbf16>, vector<128x256xbf16>, vector<16x256xf32> -> vector<16x256xf32>
    %c0_3 = arith.constant 0 : index
    %c0_4 = arith.constant 0 : index
    %3 = vector.load %arg4[%c0_3, %c0_4] : memref<1x256xf32, #tpu.memory_space<vmem>>, vector<1x256xf32>
    %4 = vector.broadcast %3 : vector<1x256xf32> to vector<16x256xf32>
    %5 = arith.addf %2, %4 : vector<16x256xf32>
    %cst_5 = arith.constant 0.000000e+00 : f32
    %6 = vector.broadcast %cst_5 : f32 to vector<16x256xf32>
    %7 = arith.maximumf %5, %6 : vector<16x256xf32>
    %8 = arith.truncf %7 : vector<16x256xf32> to vector<16x256xbf16>
    %c0_6 = arith.constant 0 : index
    %c0_7 = arith.constant 0 : index
    %9 = vector.load %arg5[%c0_6, %c0_7] : memref<256x128xbf16, #tpu.memory_space<vmem>>, vector<256x128xbf16>
    %cst_8 = arith.constant dense<0.000000e+00> : vector<16x128xf32>
    %10 = tpu.matmul %8, %9, %cst_8 {dimension_numbers = #tpu.dot_dimension_numbers<[1], [0], [0], [1], [0, 0, 1, 1], [], []>} : vector<16x256xbf16>, vector<256x128xbf16>, vector<16x128xf32> -> vector<16x128xf32>
    %c0_9 = arith.constant 0 : index
    %c0_10 = arith.constant 0 : index
    %11 = vector.load %arg6[%c0_9, %c0_10] : memref<1x128xf32, #tpu.memory_space<vmem>>, vector<1x128xf32>
    %12 = vector.broadcast %11 : vector<1x128xf32> to vector<16x128xf32>
    %13 = arith.addf %10, %12 : vector<16x128xf32>
    %cst_11 = arith.constant 0.000000e+00 : f32
    %14 = vector.broadcast %cst_11 : f32 to vector<16x128xf32>
    %15 = arith.maximumf %13, %14 : vector<16x128xf32>
    %16 = arith.truncf %15 : vector<16x128xf32> to vector<16x128xbf16>
    %c0_12 = arith.constant 0 : index
    %c0_13 = arith.constant 0 : index
    %17 = vector.load %arg7[%c0_12, %c0_13] : memref<128x128xbf16, #tpu.memory_space<vmem>>, vector<128x128xbf16>
    %cst_14 = arith.constant dense<0.000000e+00> : vector<16x128xf32>
    %18 = tpu.matmul %16, %17, %cst_14 {dimension_numbers = #tpu.dot_dimension_numbers<[1], [0], [0], [1], [0, 0, 1, 1], [], []>} : vector<16x128xbf16>, vector<128x128xbf16>, vector<16x128xf32> -> vector<16x128xf32>
    %c0_15 = arith.constant 0 : index
    %c0_16 = arith.constant 0 : index
    %19 = vector.load %arg8[%c0_15, %c0_16] : memref<1x128xf32, #tpu.memory_space<vmem>>, vector<1x128xf32>
    %20 = vector.broadcast %19 : vector<1x128xf32> to vector<16x128xf32>
    %21 = arith.addf %18, %20 : vector<16x128xf32>
    %cst_17 = arith.constant 0.000000e+00 : f32
    %22 = vector.broadcast %cst_17 : f32 to vector<16x128xf32>
    %23 = arith.maximumf %21, %22 : vector<16x128xf32>
    %24 = arith.truncf %23 : vector<16x128xf32> to vector<16x128xbf16>
    %c0_18 = arith.constant 0 : index
    %c0_19 = arith.constant 0 : index
    %25 = vector.load %arg9[%c0_18, %c0_19] : memref<128x256xbf16, #tpu.memory_space<vmem>>, vector<128x256xbf16>
    %cst_20 = arith.constant dense<0.000000e+00> : vector<16x256xf32>
    %26 = tpu.matmul %24, %25, %cst_20 {dimension_numbers = #tpu.dot_dimension_numbers<[1], [0], [0], [1], [0, 0, 1, 1], [], []>} : vector<16x128xbf16>, vector<128x256xbf16>, vector<16x256xf32> -> vector<16x256xf32>
    %c0_21 = arith.constant 0 : index
    %c0_22 = arith.constant 0 : index
    %27 = vector.load %arg10[%c0_21, %c0_22] : memref<1x256xf32, #tpu.memory_space<vmem>>, vector<1x256xf32>
    %28 = vector.broadcast %27 : vector<1x256xf32> to vector<16x256xf32>
    %29 = arith.addf %26, %28 : vector<16x256xf32>
    %30 = arith.negf %29 : vector<16x256xf32>
    %31 = math.exp %30 : vector<16x256xf32>
    %cst_23 = arith.constant 1.000000e+00 : f32
    %32 = vector.broadcast %cst_23 : f32 to vector<16x256xf32>
    %33 = arith.addf %32, %31 : vector<16x256xf32>
    %34 = arith.divf %32, %33 : vector<16x256xf32>
    %c0_24 = arith.constant 0 : index
    %c0_25 = arith.constant 0 : index
    %35 = vector.load %arg11[%c0_24, %c0_25] : memref<16x256xf32, #tpu.memory_space<vmem>>, vector<16x256xf32>
    tpu.vector_store %arg11[%c0_24, %c0_25], %34 {strides = array<i32>} : memref<16x256xf32, #tpu.memory_space<vmem>>, vector<16x256xf32>,
    return
  }
  func.func @transform_0(%arg0: i32, %arg1: i32) -> (i32, i32) {
    %c0_i32 = arith.constant 0 : i32
    %c0_i32_0 = arith.constant 0 : i32
    return %arg1, %c0_i32 : i32, i32
  }
  func.func @transform_1(%arg0: i32, %arg1: i32) -> (i32, i32) {
    %c0_i32 = arith.constant 0 : i32
    %c0_i32_0 = arith.constant 0 : i32
    %c0_i32_1 = arith.constant 0 : i32
    return %c0_i32, %c0_i32_0 : i32, i32
  }
  func.func @transform_2(%arg0: i32, %arg1: i32) -> (i32, i32) {
    %c0_i32 = arith.constant 0 : i32
    %c0_i32_0 = arith.constant 0 : i32
    %c0_i32_1 = arith.constant 0 : i32
    return %c0_i32, %c0_i32_0 : i32, i32
  }
  func.func @transform_3(%arg0: i32, %arg1: i32) -> (i32, i32) {
    %c0_i32 = arith.constant 0 : i32
    %c0_i32_0 = arith.constant 0 : i32
    %c0_i32_1 = arith.constant 0 : i32
    return %c0_i32, %c0_i32_0 : i32, i32
  }
  func.func @transform_4(%arg0: i32, %arg1: i32) -> (i32, i32) {
    %c0_i32 = arith.constant 0 : i32
    %c0_i32_0 = arith.constant 0 : i32
    %c0_i32_1 = arith.constant 0 : i32
    return %c0_i32, %c0_i32_0 : i32, i32
  }
  func.func @transform_5(%arg0: i32, %arg1: i32) -> (i32, i32) {
    %c0_i32 = arith.constant 0 : i32
    %c0_i32_0 = arith.constant 0 : i32
    %c0_i32_1 = arith.constant 0 : i32
    return %c0_i32, %c0_i32_0 : i32, i32
  }
  func.func @transform_6(%arg0: i32, %arg1: i32) -> (i32, i32) {
    %c0_i32 = arith.constant 0 : i32
    %c0_i32_0 = arith.constant 0 : i32
    %c0_i32_1 = arith.constant 0 : i32
    return %c0_i32, %c0_i32_0 : i32, i32
  }
  func.func @transform_7(%arg0: i32, %arg1: i32) -> (i32, i32) {
    %c0_i32 = arith.constant 0 : i32
    %c0_i32_0 = arith.constant 0 : i32
    return %c0_i32, %arg0 : i32, i32
  }
  func.func @transform_8(%arg0: i32, %arg1: i32) -> (i32, i32) {
    %c0_i32 = arith.constant 0 : i32
    %c0_i32_0 = arith.constant 0 : i32
    return %c0_i32, %arg0 : i32, i32
  }
  func.func @transform_9(%arg0: i32, %arg1: i32) -> (i32, i32) {
    %c0_i32 = arith.constant 0 : i32
    return %arg1, %arg0 : i32, i32
  }
}

module attributes {stable_mosaic.version = 11 : i64} {
  func.func @_decoder_kernel(%arg0: i32, %arg1: i32, %arg2: memref<16x128xbf16, #tpu.memory_space<vmem>>, %arg3: memref<128x256xbf16, #tpu.memory_space<vmem>>, %arg4: memref<1x256xf32, #tpu.memory_space<vmem>>, %arg5: memref<256x128xbf16, #tpu.memory_space<vmem>>, %arg6: memref<1x128xf32, #tpu.memory_space<vmem>>, %arg7: memref<128x128xbf16, #tpu.memory_space<vmem>>, %arg8: memref<1x128xf32, #tpu.memory_space<vmem>>, %arg9: memref<128x256xbf16, #tpu.memory_space<vmem>>, %arg10: memref<1x256xf32, #tpu.memory_space<vmem>>, %arg11: memref<16x256xf32, #tpu.memory_space<vmem>>) attributes {dimension_semantics = [#tpu.dimension_semantics<parallel>, #tpu.dimension_semantics<parallel>], iteration_bounds = array<i64: 1, 1>, scalar_prefetch = 0 : i64, scratch_operands = 0 : i64, tpu.core_type = #tpu.core_type<tc>, window_params = [{transform_indices = @transform_0, window_bounds = array<i64: 16, 128>}, {pipeline_mode = #tpu.pipeline_mode<synchronous>, transform_indices = @transform_1, window_bounds = array<i64: 128, 256>}, {pipeline_mode = #tpu.pipeline_mode<synchronous>, transform_indices = @transform_2, window_bounds = array<i64: 1, 256>}, {pipeline_mode = #tpu.pipeline_mode<synchronous>, transform_indices = @transform_3, window_bounds = array<i64: 256, 128>}, {pipeline_mode = #tpu.pipeline_mode<synchronous>, transform_indices = @transform_4, window_bounds = array<i64: 1, 128>}, {pipeline_mode = #tpu.pipeline_mode<synchronous>, transform_indices = @transform_5, window_bounds = array<i64: 128, 128>}, {pipeline_mode = #tpu.pipeline_mode<synchronous>, transform_indices = @transform_6, window_bounds = array<i64: 1, 128>}, {transform_indices = @transform_7, window_bounds = array<i64: 128, 256>}, {transform_indices = @transform_8, window_bounds = array<i64: 1, 256>}, {transform_indices = @transform_9, window_bounds = array<i64: 16, 256>}]} {
    %c0 = arith.constant 0 : index
    %c0_0 = arith.constant 0 : index
    %0 = vector.load %arg2[%c0, %c0_0] : memref<16x128xbf16, #tpu.memory_space<vmem>>, vector<16x128xbf16>
    %c0_1 = arith.constant 0 : index
    %c0_2 = arith.constant 0 : index
    %1 = vector.load %arg3[%c0_1, %c0_2] : memref<128x256xbf16, #tpu.memory_space<vmem>>, vector<128x256xbf16>
    %cst = arith.constant dense<0.000000e+00> : vector<16x256xf32>
    %2 = tpu.matmul %0, %1, %cst {dimension_numbers = #tpu.dot_dimension_numbers<[1], [0], [0], [1], [0, 0, 1, 1], [], []>} : vector<16x128xbf16>, vector<128x256xbf16>, vector<16x256xf32> -> vector<16x256xf32>
    %c0_3 = arith.constant 0 : index
    %c0_4 = arith.constant 0 : index
    %3 = vector.load %arg4[%c0_3, %c0_4] : memref<1x256xf32, #tpu.memory_space<vmem>>, vector<1x256xf32>
    %4 = vector.broadcast %3 : vector<1x256xf32> to vector<16x256xf32>
    %5 = arith.addf %2, %4 : vector<16x256xf32>
    %cst_5 = arith.constant 0.000000e+00 : f32
    %6 = vector.broadcast %cst_5 : f32 to vector<16x256xf32>
    %7 = arith.maximumf %5, %6 : vector<16x256xf32>
    %8 = arith.truncf %7 : vector<16x256xf32> to vector<16x256xbf16>
    %c0_6 = arith.constant 0 : index
    %c0_7 = arith.constant 0 : index
    %9 = vector.load %arg5[%c0_6, %c0_7] : memref<256x128xbf16, #tpu.memory_space<vmem>>, vector<256x128xbf16>
    %cst_8 = arith.constant dense<0.000000e+00> : vector<16x128xf32>
    %10 = tpu.matmul %8, %9, %cst_8 {dimension_numbers = #tpu.dot_dimension_numbers<[1], [0], [0], [1], [0, 0, 1, 1], [], []>} : vector<16x256xbf16>, vector<256x128xbf16>, vector<16x128xf32> -> vector<16x128xf32>
    %c0_9 = arith.constant 0 : index
    %c0_10 = arith.constant 0 : index
    %11 = vector.load %arg6[%c0_9, %c0_10] : memref<1x128xf32, #tpu.memory_space<vmem>>, vector<1x128xf32>
    %12 = vector.broadcast %11 : vector<1x128xf32> to vector<16x128xf32>
    %13 = arith.addf %10, %12 : vector<16x128xf32>
    %cst_11 = arith.constant 0.000000e+00 : f32
    %14 = vector.broadcast %cst_11 : f32 to vector<16x128xf32>
    %15 = arith.maximumf %13, %14 : vector<16x128xf32>
    %16 = arith.truncf %15 : vector<16x128xf32> to vector<16x128xbf16>
    %c0_12 = arith.constant 0 : index
    %c0_13 = arith.constant 0 : index
    %17 = vector.load %arg7[%c0_12, %c0_13] : memref<128x128xbf16, #tpu.memory_space<vmem>>, vector<128x128xbf16>
    %cst_14 = arith.constant dense<0.000000e+00> : vector<16x128xf32>
    %18 = tpu.matmul %16, %17, %cst_14 {dimension_numbers = #tpu.dot_dimension_numbers<[1], [0], [0], [1], [0, 0, 1, 1], [], []>} : vector<16x128xbf16>, vector<128x128xbf16>, vector<16x128xf32> -> vector<16x128xf32>
    %c0_15 = arith.constant 0 : index
    %c0_16 = arith.constant 0 : index
    %19 = vector.load %arg8[%c0_15, %c0_16] : memref<1x128xf32, #tpu.memory_space<vmem>>, vector<1x128xf32>
    %20 = vector.broadcast %19 : vector<1x128xf32> to vector<16x128xf32>
    %21 = arith.addf %18, %20 : vector<16x128xf32>
    %cst_17 = arith.constant 0.000000e+00 : f32
    %22 = vector.broadcast %cst_17 : f32 to vector<16x128xf32>
    %23 = arith.maximumf %21, %22 : vector<16x128xf32>
    %24 = arith.truncf %23 : vector<16x128xf32> to vector<16x128xbf16>
    %c0_18 = arith.constant 0 : index
    %c0_19 = arith.constant 0 : index
    %25 = vector.load %arg9[%c0_18, %c0_19] : memref<128x256xbf16, #tpu.memory_space<vmem>>, vector<128x256xbf16>
    %cst_20 = arith.constant dense<0.000000e+00> : vector<16x256xf32>
    %26 = tpu.matmul %24, %25, %cst_20 {dimension_numbers = #tpu.dot_dimension_numbers<[1], [0], [0], [1], [0, 0, 1, 1], [], []>} : vector<16x128xbf16>, vector<128x256xbf16>, vector<16x256xf32> -> vector<16x256xf32>
    %c0_21 = arith.constant 0 : index
    %c0_22 = arith.constant 0 : index
    %27 = vector.load %arg10[%c0_21, %c0_22] : memref<1x256xf32, #tpu.memory_space<vmem>>, vector<1x256xf32>
    %28 = vector.broadcast %27 : vector<1x256xf32> to vector<16x256xf32>
    %29 = arith.addf %26, %28 : vector<16x256xf32>
    %30 = arith.negf %29 : vector<16x256xf32>
    %31 = math.exp %30 : vector<16x256xf32>
    %cst_23 = arith.constant 1.000000e+00 : f32
    %32 = vector.broadcast %cst_23 : f32 to vector<16x256xf32>
    %33 = arith.addf %32, %31 : vector<16x256xf32>
    %34 = arith.divf %32, %33 : vector<16x256xf32>
    %c0_24 = arith.constant 0 : index
    %c0_25 = arith.constant 0 : index
    %35 = vector.load %arg11[%c0_24, %c0_25] : memref<16x256xf32, #tpu.memory_space<vmem>>, vector<16x256xf32>
    tpu.vector_store %arg11[%c0_24, %c0_25], %34 {strides = array<i32>} : memref<16x256xf32, #tpu.memory_space<vmem>>, vector<16x256xf32>,
    return
  }
  func.func @transform_0(%arg0: i32, %arg1: i32) -> (i32, i32) {
    %c0_i32 = arith.constant 0 : i32
    %c0_i32_0 = arith.constant 0 : i32
    return %arg1, %c0_i32 : i32, i32
  }
  func.func @transform_1(%arg0: i32, %arg1: i32) -> (i32, i32) {
    %c0_i32 = arith.constant 0 : i32
    %c0_i32_0 = arith.constant 0 : i32
    %c0_i32_1 = arith.constant 0 : i32
    return %c0_i32, %c0_i32_0 : i32, i32
  }
  func.func @transform_2(%arg0: i32, %arg1: i32) -> (i32, i32) {
    %c0_i32 = arith.constant 0 : i32
    %c0_i32_0 = arith.constant 0 : i32
    %c0_i32_1 = arith.constant 0 : i32
    return %c0_i32, %c0_i32_0 : i32, i32
  }
  func.func @transform_3(%arg0: i32, %arg1: i32) -> (i32, i32) {
    %c0_i32 = arith.constant 0 : i32
    %c0_i32_0 = arith.constant 0 : i32
    %c0_i32_1 = arith.constant 0 : i32
    return %c0_i32, %c0_i32_0 : i32, i32
  }
  func.func @transform_4(%arg0: i32, %arg1: i32) -> (i32, i32) {
    %c0_i32 = arith.constant 0 : i32
    %c0_i32_0 = arith.constant 0 : i32
    %c0_i32_1 = arith.constant 0 : i32
    return %c0_i32, %c0_i32_0 : i32, i32
  }
  func.func @transform_5(%arg0: i32, %arg1: i32) -> (i32, i32) {
    %c0_i32 = arith.constant 0 : i32
    %c0_i32_0 = arith.constant 0 : i32
    %c0_i32_1 = arith.constant 0 : i32
    return %c0_i32, %c0_i32_0 : i32, i32
  }
  func.func @transform_6(%arg0: i32, %arg1: i32) -> (i32, i32) {
    %c0_i32 = arith.constant 0 : i32
    %c0_i32_0 = arith.constant 0 : i32
    %c0_i32_1 = arith.constant 0 : i32
    return %c0_i32, %c0_i32_0 : i32, i32
  }
  func.func @transform_7(%arg0: i32, %arg1: i32) -> (i32, i32) {
    %c0_i32 = arith.constant 0 : i32
    %c0_i32_0 = arith.constant 0 : i32
    return %c0_i32, %arg0 : i32, i32
  }
  func.func @transform_8(%arg0: i32, %arg1: i32) -> (i32, i32) {
    %c0_i32 = arith.constant 0 : i32
    %c0_i32_0 = arith.constant 0 : i32
    return %c0_i32, %arg0 : i32, i32
  }
  func.func @transform_9(%arg0: i32, %arg1: i32) -> (i32, i32) {
    %c0_i32 = arith.constant 0 : i32
    return %arg1, %arg0 : i32, i32
  }
}

</mosaic_0001>

<llo_original>
// kernel: tpu_custom_call.1
$region0: #{tpu_custom_call.1}
  #allocation0 [shape = 'u32[]', space=smem, size = 0x4, offset = 0x4, fixed_abs, tag = 'smem constant byte address 0x4 - core index']
  #allocation1 [shape = 'u32[144,128]{1,0:T(1,128)}', space=vmem, size = 0x12000, scoped, tag = 'internal scratch']
  %s0 = inlined_call_operand.hbm [shape: bf16[16,128], index: 0, kind: input, shape index: {}]
  %s1 = inlined_call_operand.hbm [shape: bf16[128,256], index: 1, kind: input, shape index: {}]
  %s2 = inlined_call_operand.hbm [shape: f32[1,256], index: 2, kind: input, shape index: {}]
  %s3 = inlined_call_operand.hbm [shape: bf16[256,128], index: 3, kind: input, shape index: {}]
  %s4 = inlined_call_operand.hbm [shape: f32[1,128], index: 4, kind: input, shape index: {}]
  %s5 = inlined_call_operand.hbm [shape: bf16[128,128], index: 5, kind: input, shape index: {}]
  %s6 = inlined_call_operand.hbm [shape: f32[1,128], index: 6, kind: input, shape index: {}]
  %s7 = inlined_call_operand.hbm [shape: bf16[128,256], index: 7, kind: input, shape index: {}]
  %s8 = inlined_call_operand.hbm [shape: f32[1,256], index: 8, kind: input, shape index: {}]
  %s9 = inlined_call_operand.hbm [shape: f32[16,256], index: 9, kind: output, shape index: {}]
  %s10 = sld [smem:[#allocation0]]
  $region82: #{tpu_custom_call.1} parent=0
    _
  %s12 = ssub.s32 1, %s10
  %s13 = scalar_select 0, %s12, %s10
  $region1: #{tpu_custom_call.1} parent=0
    #allocation2 [shape = 'u8[4096]{0}', space=vmem, size = 0x1000, scoped, tag = 'input window, operand 0, single buffered']
    #allocation3 [shape = 's32[1]{0}', space=sflag, size = 0x4, scoped, tag = 'scoped memory for tpu_custom_call.1']
    #allocation4 [shape = 's32[1]{0}', space=sflag, size = 0x4, scoped, tag = 'scoped memory for tpu_custom_call.1']
    #allocation5 [shape = 'u8[65536]{0}', space=vmem, size = 0x10000, scoped, tag = 'input window, operand 1, single buffered']
    #allocation6 [shape = 's32[1]{0}', space=sflag, size = 0x4, scoped, tag = 'scoped memory for tpu_custom_call.1']
    #allocation7 [shape = 'u8[1024]{0}', space=vmem, size = 0x400, scoped, tag = 'input window, operand 2, single buffered']
    #allocation8 [shape = 'u8[65536]{0}', space=vmem, size = 0x10000, scoped, tag = 'input window, operand 3, single buffered']
    #allocation9 [shape = 's32[1]{0}', space=sflag, size = 0x4, scoped, tag = 'scoped memory for tpu_custom_call.1']
    #allocation10 [shape = 'u8[512]{0}', space=vmem, size = 0x400, scoped, tag = 'input window, operand 4, single buffered']
    #allocation11 [shape = 'u8[32768]{0}', space=vmem, size = 0x8000, scoped, tag = 'input window, operand 5, single buffered']
    #allocation12 [shape = 's32[1]{0}', space=sflag, size = 0x4, scoped, tag = 'scoped memory for tpu_custom_call.1']
    #allocation13 [shape = 'u8[512]{0}', space=vmem, size = 0x400, scoped, tag = 'input window, operand 6, single buffered']
    #allocation14 [shape = 'u8[65536]{0}', space=vmem, size = 0x10000, scoped, tag = 'input window, operand 7, single buffered']
    #allocation15 [shape = 's32[1]{0}', space=sflag, size = 0x4, scoped, tag = 'scoped memory for tpu_custom_call.1']
    #allocation16 [shape = 'u8[1024]{0}', space=vmem, size = 0x400, scoped, tag = 'input window, operand 8, single buffered']
    #allocation17 [shape = 'u8[16384]{0}', space=vmem, size = 0x4000, scoped, tag = 'output window, operand 0, single buffered']
    %14 = vsyncpa [#allocation3], 0
    %15 = vsyncpa [#allocation6], 0
    %16 = vsyncpa [#allocation9], 0
    %17 = vsyncpa [#allocation12], 0
    %18 = vsyncpa [#allocation15], 0
    %19 = vsyncpa [#allocation4], 0
    // Predicated region
    $region2: #{tpu_custom_call.1} parent=1 // pred_check
      _
    $region3: #{tpu_custom_call.1} parent=1 // pred_check_branch
      %21 = sbr.rel (0) target = $region5
    $region4: #{tpu_custom_call.1} parent=1 // pred_region
      %s23 = ssub.s32 128, 128
      %24 = vsyncadd [#allocation3], %s23
      %s25 = sshll.u32 [#allocation2], 4
      %s26 = int_to_ptr.vmem [resolvable:$true] %s25
      %31 = dma.hbm_to_vmem [thread:$0]  %s0, 128, %s26, [#allocation3], 64, 64, 4
    $region5: #{tpu_custom_call.1} parent=1 // pred_fallthru
      _
    // Predicated region
    $region6: #{tpu_custom_call.1} parent=1 // pred_check
      _
    $region7: #{tpu_custom_call.1} parent=1 // pred_check_branch
      %33 = sbr.rel (0) target = $region9
    $region8: #{tpu_custom_call.1} parent=1 // pred_region
      %s35 = ssub.s32 2048, 2048
      %36 = vsyncadd [#allocation6], %s35
      %s37 = sshll.u32 [#allocation5], 4
      %s38 = int_to_ptr.vmem [resolvable:$true] %s37
      %43 = dma.hbm_to_vmem [thread:$0]  %s1, 2048, %s38, [#allocation6], 128, 128, 8
    $region9: #{tpu_custom_call.1} parent=1 // pred_fallthru
      _
    // Predicated region
    $region10: #{tpu_custom_call.1} parent=1 // pred_check
      _
    $region11: #{tpu_custom_call.1} parent=1 // pred_check_branch
      %45 = sbr.rel (0) target = $region13
    $region12: #{tpu_custom_call.1} parent=1 // pred_region
      %s47 = ssub.s32 32, 32
      %48 = vsyncadd [#allocation6], %s47
      %s50 = sshll.u32 [#allocation7], 4
      %s51 = int_to_ptr.vmem [resolvable:$true] %s50
      %53 = dma.hbm_to_vmem [thread:$0]  %s2, 32, %s51, [#allocation6]
    $region13: #{tpu_custom_call.1} parent=1 // pred_fallthru
      _
    // Predicated region
    $region14: #{tpu_custom_call.1} parent=1 // pred_check
      _
    $region15: #{tpu_custom_call.1} parent=1 // pred_check_branch
      %55 = sbr.rel (0) target = $region17
    $region16: #{tpu_custom_call.1} parent=1 // pred_region
      %s57 = ssub.s32 2048, 2048
      %58 = vsyncadd [#allocation9], %s57
      %s59 = sshll.u32 [#allocation8], 4
      %s60 = int_to_ptr.vmem [resolvable:$true] %s59
      %65 = dma.hbm_to_vmem [thread:$0]  %s3, 2048, %s60, [#allocation9], 64, 64, 4
    $region17: #{tpu_custom_call.1} parent=1 // pred_fallthru
      _
    // Predicated region
    $region18: #{tpu_custom_call.1} parent=1 // pred_check
      _
    $region19: #{tpu_custom_call.1} parent=1 // pred_check_branch
      %67 = sbr.rel (0) target = $region21
    $region20: #{tpu_custom_call.1} parent=1 // pred_region
      %s69 = ssub.s32 16, 16
      %70 = vsyncadd [#allocation9], %s69
      %s72 = sshll.u32 [#allocation10], 4
      %s73 = int_to_ptr.vmem [resolvable:$true] %s72
      %75 = dma.hbm_to_vmem [thread:$0]  %s4, 16, %s73, [#allocation9]
    $region21: #{tpu_custom_call.1} parent=1 // pred_fallthru
      _
    // Predicated region
    $region22: #{tpu_custom_call.1} parent=1 // pred_check
      _
    $region23: #{tpu_custom_call.1} parent=1 // pred_check_branch
      %77 = sbr.rel (0) target = $region25
    $region24: #{tpu_custom_call.1} parent=1 // pred_region
      %s79 = ssub.s32 1024, 1024
      %80 = vsyncadd [#allocation12], %s79
      %s81 = sshll.u32 [#allocation11], 4
      %s82 = int_to_ptr.vmem [resolvable:$true] %s81
      %87 = dma.hbm_to_vmem [thread:$0]  %s5, 1024, %s82, [#allocation12], 64, 64, 4
    $region25: #{tpu_custom_call.1} parent=1 // pred_fallthru
      _
    // Predicated region
    $region26: #{tpu_custom_call.1} parent=1 // pred_check
      _
    $region27: #{tpu_custom_call.1} parent=1 // pred_check_branch
      %89 = sbr.rel (0) target = $region29
    $region28: #{tpu_custom_call.1} parent=1 // pred_region
      %s91 = ssub.s32 16, 16
      %92 = vsyncadd [#allocation12], %s91
      %s94 = sshll.u32 [#allocation13], 4
      %s95 = int_to_ptr.vmem [resolvable:$true] %s94
      %97 = dma.hbm_to_vmem [thread:$0]  %s6, 16, %s95, [#allocation12]
    $region29: #{tpu_custom_call.1} parent=1 // pred_fallthru
      _
    // Predicated region
    $region30: #{tpu_custom_call.1} parent=1 // pred_check
      _
    $region31: #{tpu_custom_call.1} parent=1 // pred_check_branch
      %99 = sbr.rel (0) target = $region33
    $region32: #{tpu_custom_call.1} parent=1 // pred_region
      %s101 = ssub.s32 2048, 2048
      %102 = vsyncadd [#allocation15], %s101
      %s103 = sshll.u32 [#allocation14], 4
      %s104 = int_to_ptr.vmem [resolvable:$true] %s103
      %109 = dma.hbm_to_vmem [thread:$0]  %s7, 2048, %s104, [#allocation15], 128, 128, 8
    $region33: #{tpu_custom_call.1} parent=1 // pred_fallthru
      _
    // Predicated region
    $region34: #{tpu_custom_call.1} parent=1 // pred_check
      _
    $region35: #{tpu_custom_call.1} parent=1 // pred_check_branch
      %111 = sbr.rel (0) target = $region37
    $region36: #{tpu_custom_call.1} parent=1 // pred_region
      %s113 = ssub.s32 32, 32
      %114 = vsyncadd [#allocation15], %s113
      %s116 = sshll.u32 [#allocation16], 4
      %s117 = int_to_ptr.vmem [resolvable:$true] %s116
      %119 = dma.hbm_to_vmem [thread:$0]  %s8, 32, %s117, [#allocation15]
    $region37: #{tpu_custom_call.1} parent=1 // pred_fallthru
      _
    // Predicated region
    $region38: #{tpu_custom_call.1} parent=1 // pred_check
      _
    $region39: #{tpu_custom_call.1} parent=1 // pred_check_branch
      %121 = sbr.rel (0) target = $region41
    $region40: #{tpu_custom_call.1} parent=1 // pred_region
      %122 = dma.done [#allocation3], 128
    $region41: #{tpu_custom_call.1} parent=1 // pred_fallthru
      _
    // Predicated region
    $region42: #{tpu_custom_call.1} parent=1 // pred_check
      _
    $region43: #{tpu_custom_call.1} parent=1 // pred_check_branch
      %124 = sbr.rel (0) target = $region45
    $region44: #{tpu_custom_call.1} parent=1 // pred_region
      %125 = dma.done [#allocation6], 2048
    $region45: #{tpu_custom_call.1} parent=1 // pred_fallthru
      _
    // Predicated region
    $region46: #{tpu_custom_call.1} parent=1 // pred_check
      _
    $region47: #{tpu_custom_call.1} parent=1 // pred_check_branch
      %127 = sbr.rel (0) target = $region49
    $region48: #{tpu_custom_call.1} parent=1 // pred_region
      %128 = dma.done [#allocation6], 32
    $region49: #{tpu_custom_call.1} parent=1 // pred_fallthru
      _
    // Predicated region
    $region50: #{tpu_custom_call.1} parent=1 // pred_check
      _
    $region51: #{tpu_custom_call.1} parent=1 // pred_check_branch
      %130 = sbr.rel (0) target = $region53
    $region52: #{tpu_custom_call.1} parent=1 // pred_region
      %131 = dma.done [#allocation9], 2048
    $region53: #{tpu_custom_call.1} parent=1 // pred_fallthru
      _
    // Predicated region
    $region54: #{tpu_custom_call.1} parent=1 // pred_check
      _
    $region55: #{tpu_custom_call.1} parent=1 // pred_check_branch
      %133 = sbr.rel (0) target = $region57
    $region56: #{tpu_custom_call.1} parent=1 // pred_region
      %134 = dma.done [#allocation9], 16
    $region57: #{tpu_custom_call.1} parent=1 // pred_fallthru
      _
    // Predicated region
    $region58: #{tpu_custom_call.1} parent=1 // pred_check
      _
    $region59: #{tpu_custom_call.1} parent=1 // pred_check_branch
      %136 = sbr.rel (0) target = $region61
    $region60: #{tpu_custom_call.1} parent=1 // pred_region
      %137 = dma.done [#allocation12], 1024
    $region61: #{tpu_custom_call.1} parent=1 // pred_fallthru
      _
    // Predicated region
    $region62: #{tpu_custom_call.1} parent=1 // pred_check
      _
    $region63: #{tpu_custom_call.1} parent=1 // pred_check_branch
      %139 = sbr.rel (0) target = $region65
    $region64: #{tpu_custom_call.1} parent=1 // pred_region
      %140 = dma.done [#allocation12], 16
    $region65: #{tpu_custom_call.1} parent=1 // pred_fallthru
      _
    // Predicated region
    $region66: #{tpu_custom_call.1} parent=1 // pred_check
      _
    $region67: #{tpu_custom_call.1} parent=1 // pred_check_branch
      %142 = sbr.rel (0) target = $region69
    $region68: #{tpu_custom_call.1} parent=1 // pred_region
      %143 = dma.done [#allocation15], 2048
    $region69: #{tpu_custom_call.1} parent=1 // pred_fallthru
      _
    // Predicated region
    $region70: #{tpu_custom_call.1} parent=1 // pred_check
      _
    $region71: #{tpu_custom_call.1} parent=1 // pred_check_branch
      %145 = sbr.rel (0) target = $region73
    $region72: #{tpu_custom_call.1} parent=1 // pred_region
      %146 = dma.done [#allocation15], 32
    $region73: #{tpu_custom_call.1} parent=1 // pred_fallthru
      _
    %v148 = vld [vmem:[#allocation2] sm:$0xf]
    %v149 = vld [vmem:[#allocation2 + $0x4] sm:$0xf]
    %v150 = vld [vmem:[#allocation5] sm:$0xff]
    %v151 = vld [vmem:[#allocation5 + $0x8] sm:$0xff]
    %v152 = vld [vmem:[#allocation5 + $0x10] sm:$0xff]
    %v153 = vld [vmem:[#allocation5 + $0x18] sm:$0xff]
    %v154 = vld [vmem:[#allocation5 + $0x20] sm:$0xff]
    %v155 = vld [vmem:[#allocation5 + $0x28] sm:$0xff]
    %v156 = vld [vmem:[#allocation5 + $0x30] sm:$0xff]
    %v157 = vld [vmem:[#allocation5 + $0x38] sm:$0xff]
    %v158 = vld [vmem:[#allocation5 + $0x40] sm:$0xff]
    %v159 = vld [vmem:[#allocation5 + $0x48] sm:$0xff]
    %v160 = vld [vmem:[#allocation5 + $0x50] sm:$0xff]
    %v161 = vld [vmem:[#allocation5 + $0x58] sm:$0xff]
    %v162 = vld [vmem:[#allocation5 + $0x60] sm:$0xff]
    %v163 = vld [vmem:[#allocation5 + $0x68] sm:$0xff]
    %v164 = vld [vmem:[#allocation5 + $0x70] sm:$0xff]
    %v165 = vld [vmem:[#allocation5 + $0x78] sm:$0xff]
    %v166 = vld [vmem:[#allocation7] sm:$0x3]
    %v168 = vlaneseq
    %v169 = vshrl.u32 %v168, 7
    %v170 = vsub.s32 0, %v169
    %v171 = vrot.slane %v166, %v170
    %v172 = vlaneseq
    %v173 = vshrl.u32 %v172, 7
    %v174 = vsub.s32 1, %v173
    %v175 = vrot.slane %v166, %v174
    %v180 = vunpack.c.l.b16 %v148
    %v181 = vunpack.c.l.b16 %v149
    %v182 = vpack.c.b16 %v181, %v180
    %v200 = vunpack.c.l.b16 %v150
    %v201 = vunpack.c.h.b16 %v150
    %v202 = vunpack.c.l.b16 %v151
    %v203 = vunpack.c.h.b16 %v151
    %v204 = vunpack.c.l.b16 %v152
    %v205 = vunpack.c.h.b16 %v152
    %v206 = vunpack.c.l.b16 %v153
    %v207 = vunpack.c.h.b16 %v153
    %v208 = vunpack.c.l.b16 %v154
    %v209 = vunpack.c.h.b16 %v154
    %v210 = vunpack.c.l.b16 %v155
    %v211 = vunpack.c.h.b16 %v155
    %v212 = vunpack.c.l.b16 %v156
    %v213 = vunpack.c.h.b16 %v156
    %v214 = vunpack.c.l.b16 %v157
    %v215 = vunpack.c.h.b16 %v157
    %v216 = vunpack.c.l.b16 %v158
    %v217 = vunpack.c.h.b16 %v158
    %v218 = vunpack.c.l.b16 %v159
    %v219 = vunpack.c.h.b16 %v159
    %v220 = vunpack.c.l.b16 %v160
    %v221 = vunpack.c.h.b16 %v160
    %v222 = vunpack.c.l.b16 %v161
    %v223 = vunpack.c.h.b16 %v161
    %v224 = vunpack.c.l.b16 %v162
    %v225 = vunpack.c.h.b16 %v162
    %v226 = vunpack.c.l.b16 %v163
    %v227 = vunpack.c.h.b16 %v163
    %v228 = vunpack.c.l.b16 %v164
    %v229 = vunpack.c.h.b16 %v164
    %v230 = vunpack.c.l.b16 %v165
    %v231 = vunpack.c.h.b16 %v165
    %v232 = vpack.c.b16 %v202, %v200
    %v233 = vpack.c.b16 %v203, %v201
    %v234 = vpack.c.b16 %v206, %v204
    %v235 = vpack.c.b16 %v207, %v205
    %v236 = vpack.c.b16 %v210, %v208
    %v237 = vpack.c.b16 %v211, %v209
    %v238 = vpack.c.b16 %v214, %v212
    %v239 = vpack.c.b16 %v215, %v213
    %v240 = vpack.c.b16 %v218, %v216
    %v241 = vpack.c.b16 %v219, %v217
    %v242 = vpack.c.b16 %v222, %v220
    %v243 = vpack.c.b16 %v223, %v221
    %v244 = vpack.c.b16 %v226, %v224
    %v245 = vpack.c.b16 %v227, %v225
    %v246 = vpack.c.b16 %v230, %v228
    %v247 = vpack.c.b16 %v231, %v229
    %264 = vmatprep.subr.bf16.mxu0 %v233
    %265 = vmatpush1.bf16.msra.mxu0 %v232
    %266 = vmatprep.subr.bf16.mxu0 %v235
    %267 = vmatpush1.bf16.msra.mxu0 %v234
    %268 = vmatprep.subr.bf16.mxu0 %v237
    %269 = vmatpush1.bf16.msra.mxu0 %v236
    %270 = vmatprep.subr.bf16.mxu0 %v239
    %271 = vmatpush1.bf16.msra.mxu0 %v238
    %272 = vmatprep.subr.bf16.mxu0 %v241
    %273 = vmatpush1.bf16.msra.mxu0 %v240
    %274 = vmatprep.subr.bf16.mxu0 %v243
    %275 = vmatpush1.bf16.msra.mxu0 %v242
    %276 = vmatprep.subr.bf16.mxu0 %v245
    %277 = vmatpush1.bf16.msra.mxu0 %v244
    %278 = vmatprep.subr.bf16.mxu0 %v247
    %279 = vmatpush1.bf16.msra.mxu0 %v246
    %280 = vmatprep.subr.bf16.mxu0 0
    %281 = vmatpush1.bf16.msra.mxu0 0
    %282 = vmatprep.subr.bf16.mxu0 0
    %283 = vmatpush1.bf16.msra.mxu0 0
    %284 = vmatprep.subr.bf16.mxu0 0
    %285 = vmatpush1.bf16.msra.mxu0 0
    %286 = vmatprep.subr.bf16.mxu0 0
    %287 = vmatpush1.bf16.msra.mxu0 0
    %288 = vmatprep.subr.bf16.mxu0 0
    %289 = vmatpush1.bf16.msra.mxu0 0
    %290 = vmatprep.subr.bf16.mxu0 0
    %291 = vmatpush1.bf16.msra.mxu0 0
    %292 = vmatprep.subr.bf16.mxu0 0
    %293 = vmatpush1.bf16.msra.mxu0 0
    %294 = vmatprep.subr.bf16.mxu0 0
    %295 = vmatpush1.bf16.msra.mxu0 0
    %296 = vmatprep.mubr.bf16.mxu0 0
    %297 = vmatmul.mubr.bf16.gmra.mrb[0].mxu0 %v182
    %v298 = vpop.f32.mrb[0].mxu0
    %v299 = vadd.f32 %v171, %v298
    %v300 = vpop.f32.mrb[0].mxu0
    %v301 = vadd.f32 %v175, %v300
    %v302 = vpop.f32.mrb[0].mxu0
    %v303 = vadd.f32 %v171, %v302
    %v304 = vpop.f32.mrb[0].mxu0
    %v305 = vadd.f32 %v175, %v304
    %306 = vdwg.mxu0
    %v307 = vmax.f32 %v299, 0.0
    %v308 = vmax.f32 %v301, 0.0
    %v309 = vmax.f32 %v303, 0.0
    %v310 = vmax.f32 %v305, 0.0
    %v311 = vpack.c.bf16 %v309, %v307
    %v312 = vpack.c.bf16 %v310, %v308
    %v313 = vld [vmem:[#allocation8] sm:$0xf]
    %v314 = vld [vmem:[#allocation8 + $0x4] sm:$0xf]
    %v315 = vld [vmem:[#allocation8 + $0x8] sm:$0xf]
    %v316 = vld [vmem:[#allocation8 + $0xc] sm:$0xf]
    %v317 = vld [vmem:[#allocation8 + $0x10] sm:$0xf]
    %v318 = vld [vmem:[#allocation8 + $0x14] sm:$0xf]
    %v319 = vld [vmem:[#allocation8 + $0x18] sm:$0xf]
    %v320 = vld [vmem:[#allocation8 + $0x1c] sm:$0xf]
    %v321 = vld [vmem:[#allocation8 + $0x20] sm:$0xf]
    %v322 = vld [vmem:[#allocation8 + $0x24] sm:$0xf]
    %v323 = vld [vmem:[#allocation8 + $0x28] sm:$0xf]
    %v324 = vld [vmem:[#allocation8 + $0x2c] sm:$0xf]
    %v325 = vld [vmem:[#allocation8 + $0x30] sm:$0xf]
    %v326 = vld [vmem:[#allocation8 + $0x34] sm:$0xf]
    %v327 = vld [vmem:[#allocation8 + $0x38] sm:$0xf]
    %v328 = vld [vmem:[#allocation8 + $0x3c] sm:$0xf]
    %v329 = vld [vmem:[#allocation8 + $0x40] sm:$0xf]
    %v330 = vld [vmem:[#allocation8 + $0x44] sm:$0xf]
    %v331 = vld [vmem:[#allocation8 + $0x48] sm:$0xf]
    %v332 = vld [vmem:[#allocation8 + $0x4c] sm:$0xf]
    %v333 = vld [vmem:[#allocation8 + $0x50] sm:$0xf]
    %v334 = vld [vmem:[#allocation8 + $0x54] sm:$0xf]
    %v335 = vld [vmem:[#allocation8 + $0x58] sm:$0xf]
    %v336 = vld [vmem:[#allocation8 + $0x5c] sm:$0xf]
    %v337 = vld [vmem:[#allocation8 + $0x60] sm:$0xf]
    %v338 = vld [vmem:[#allocation8 + $0x64] sm:$0xf]
    %v339 = vld [vmem:[#allocation8 + $0x68] sm:$0xf]
    %v340 = vld [vmem:[#allocation8 + $0x6c] sm:$0xf]
    %v341 = vld [vmem:[#allocation8 + $0x70] sm:$0xf]
    %v342 = vld [vmem:[#allocation8 + $0x74] sm:$0xf]
    %v343 = vld [vmem:[#allocation8 + $0x78] sm:$0xf]
    %v344 = vld [vmem:[#allocation8 + $0x7c] sm:$0xf]
    %v345 = vld [vmem:[#allocation10] sm:$0x1]
    %v347 = vlaneseq
    %v348 = vshrl.u32 %v347, 7
    %v349 = vsub.s32 0, %v348
    %v350 = vrot.slane %v345, %v349
    %v384 = vunpack.c.l.b16 %v313
    %v385 = vunpack.c.l.b16 %v314
    %v386 = vunpack.c.l.b16 %v315
    %v387 = vunpack.c.l.b16 %v316
    %v388 = vunpack.c.l.b16 %v317
    %v389 = vunpack.c.l.b16 %v318
    %v390 = vunpack.c.l.b16 %v319
    %v391 = vunpack.c.l.b16 %v320
    %v392 = vunpack.c.l.b16 %v321
    %v393 = vunpack.c.l.b16 %v322
    %v394 = vunpack.c.l.b16 %v323
    %v395 = vunpack.c.l.b16 %v324
    %v396 = vunpack.c.l.b16 %v325
    %v397 = vunpack.c.l.b16 %v326
    %v398 = vunpack.c.l.b16 %v327
    %v399 = vunpack.c.l.b16 %v328
    %v400 = vunpack.c.l.b16 %v329
    %v401 = vunpack.c.l.b16 %v330
    %v402 = vunpack.c.l.b16 %v331
    %v403 = vunpack.c.l.b16 %v332
    %v404 = vunpack.c.l.b16 %v333
    %v405 = vunpack.c.l.b16 %v334
    %v406 = vunpack.c.l.b16 %v335
    %v407 = vunpack.c.l.b16 %v336
    %v408 = vunpack.c.l.b16 %v337
    %v409 = vunpack.c.l.b16 %v338
    %v410 = vunpack.c.l.b16 %v339
    %v411 = vunpack.c.l.b16 %v340
    %v412 = vunpack.c.l.b16 %v341
    %v413 = vunpack.c.l.b16 %v342
    %v414 = vunpack.c.l.b16 %v343
    %v415 = vunpack.c.l.b16 %v344
    %v416 = vpack.c.b16 %v385, %v384
    %v417 = vpack.c.b16 %v387, %v386
    %v418 = vpack.c.b16 %v389, %v388
    %v419 = vpack.c.b16 %v391, %v390
    %v420 = vpack.c.b16 %v393, %v392
    %v421 = vpack.c.b16 %v395, %v394
    %v422 = vpack.c.b16 %v397, %v396
    %v423 = vpack.c.b16 %v399, %v398
    %v424 = vpack.c.b16 %v401, %v400
    %v425 = vpack.c.b16 %v403, %v402
    %v426 = vpack.c.b16 %v405, %v404
    %v427 = vpack.c.b16 %v407, %v406
    %v428 = vpack.c.b16 %v409, %v408
    %v429 = vpack.c.b16 %v411, %v410
    %v430 = vpack.c.b16 %v413, %v412
    %v431 = vpack.c.b16 %v415, %v414
    %448 = vmatprep.subr.bf16.mxu0 0
    %449 = vmatpush1.bf16.msra.mxu0 %v416
    %450 = vmatprep.subr.bf16.mxu0 0
    %451 = vmatpush1.bf16.msra.mxu0 %v417
    %452 = vmatprep.subr.bf16.mxu0 0
    %453 = vmatpush1.bf16.msra.mxu0 %v418
    %454 = vmatprep.subr.bf16.mxu0 0
    %455 = vmatpush1.bf16.msra.mxu0 %v419
    %456 = vmatprep.subr.bf16.mxu0 0
    %457 = vmatpush1.bf16.msra.mxu0 %v420
    %458 = vmatprep.subr.bf16.mxu0 0
    %459 = vmatpush1.bf16.msra.mxu0 %v421
    %460 = vmatprep.subr.bf16.mxu0 0
    %461 = vmatpush1.bf16.msra.mxu0 %v422
    %462 = vmatprep.subr.bf16.mxu0 0
    %463 = vmatpush1.bf16.msra.mxu0 %v423
    %464 = vmatprep.subr.bf16.mxu0 0
    %465 = vmatpush1.bf16.msra.mxu0 %v424
    %466 = vmatprep.subr.bf16.mxu0 0
    %467 = vmatpush1.bf16.msra.mxu0 %v425
    %468 = vmatprep.subr.bf16.mxu0 0
    %469 = vmatpush1.bf16.msra.mxu0 %v426
    %470 = vmatprep.subr.bf16.mxu0 0
    %471 = vmatpush1.bf16.msra.mxu0 %v427
    %472 = vmatprep.subr.bf16.mxu0 0
    %473 = vmatpush1.bf16.msra.mxu0 %v428
    %474 = vmatprep.subr.bf16.mxu0 0
    %475 = vmatpush1.bf16.msra.mxu0 %v429
    %476 = vmatprep.subr.bf16.mxu0 0
    %477 = vmatpush1.bf16.msra.mxu0 %v430
    %478 = vmatprep.subr.bf16.mxu0 0
    %479 = vmatpush1.bf16.msra.mxu0 %v431
    %480 = vmatprep.mubr.bf16.mxu0 %v312
    %481 = vmatmul.mubr.bf16.gmra.mrb[0].mxu0 %v311
    %v482 = vpop.f32.mrb[0].mxu0
    %v483 = vadd.f32 %v350, %v482
    %v484 = vpop.f32.mrb[0].mxu0
    %v485 = vpop.f32.mrb[0].mxu0
    %v486 = vadd.f32 %v350, %v485
    %v487 = vpop.f32.mrb[0].mxu0
    %488 = vdwg.mxu0
    %v489 = vmax.f32 %v483, 0.0
    %v490 = vmax.f32 %v486, 0.0
    %v491 = vpack.c.bf16 %v490, %v489
    %v492 = vld [vmem:[#allocation11] sm:$0xf]
    %v493 = vld [vmem:[#allocation11 + $0x4] sm:$0xf]
    %v494 = vld [vmem:[#allocation11 + $0x8] sm:$0xf]
    %v495 = vld [vmem:[#allocation11 + $0xc] sm:$0xf]
    %v496 = vld [vmem:[#allocation11 + $0x10] sm:$0xf]
    %v497 = vld [vmem:[#allocation11 + $0x14] sm:$0xf]
    %v498 = vld [vmem:[#allocation11 + $0x18] sm:$0xf]
    %v499 = vld [vmem:[#allocation11 + $0x1c] sm:$0xf]
    %v500 = vld [vmem:[#allocation11 + $0x20] sm:$0xf]
    %v501 = vld [vmem:[#allocation11 + $0x24] sm:$0xf]
    %v502 = vld [vmem:[#allocation11 + $0x28] sm:$0xf]
    %v503 = vld [vmem:[#allocation11 + $0x2c] sm:$0xf]
    %v504 = vld [vmem:[#allocation11 + $0x30] sm:$0xf]
    %v505 = vld [vmem:[#allocation11 + $0x34] sm:$0xf]
    %v506 = vld [vmem:[#allocation11 + $0x38] sm:$0xf]
    %v507 = vld [vmem:[#allocation11 + $0x3c] sm:$0xf]
    %v508 = vld [vmem:[#allocation13] sm:$0x1]
    %v510 = vlaneseq
    %v511 = vshrl.u32 %v510, 7
    %v512 = vsub.s32 0, %v511
    %v513 = vrot.slane %v508, %v512
    %v531 = vunpack.c.l.b16 %v492
    %v532 = vunpack.c.l.b16 %v493
    %v533 = vunpack.c.l.b16 %v494
    %v534 = vunpack.c.l.b16 %v495
    %v535 = vunpack.c.l.b16 %v496
    %v536 = vunpack.c.l.b16 %v497
    %v537 = vunpack.c.l.b16 %v498
    %v538 = vunpack.c.l.b16 %v499
    %v539 = vunpack.c.l.b16 %v500
    %v540 = vunpack.c.l.b16 %v501
    %v541 = vunpack.c.l.b16 %v502
    %v542 = vunpack.c.l.b16 %v503
    %v543 = vunpack.c.l.b16 %v504
    %v544 = vunpack.c.l.b16 %v505
    %v545 = vunpack.c.l.b16 %v506
    %v546 = vunpack.c.l.b16 %v507
    %v547 = vpack.c.b16 %v532, %v531
    %v548 = vpack.c.b16 %v534, %v533
    %v549 = vpack.c.b16 %v536, %v535
    %v550 = vpack.c.b16 %v538, %v537
    %v551 = vpack.c.b16 %v540, %v539
    %v552 = vpack.c.b16 %v542, %v541
    %v553 = vpack.c.b16 %v544, %v543
    %v554 = vpack.c.b16 %v546, %v545
    %563 = vmatprep.subr.bf16.mxu0 0
    %564 = vmatpush1.bf16.msra.mxu0 %v547
    %565 = vmatprep.subr.bf16.mxu0 0
    %566 = vmatpush1.bf16.msra.mxu0 %v548
    %567 = vmatprep.subr.bf16.mxu0 0
    %568 = vmatpush1.bf16.msra.mxu0 %v549
    %569 = vmatprep.subr.bf16.mxu0 0
    %570 = vmatpush1.bf16.msra.mxu0 %v550
    %571 = vmatprep.subr.bf16.mxu0 0
    %572 = vmatpush1.bf16.msra.mxu0 %v551
    %573 = vmatprep.subr.bf16.mxu0 0
    %574 = vmatpush1.bf16.msra.mxu0 %v552
    %575 = vmatprep.subr.bf16.mxu0 0
    %576 = vmatpush1.bf16.msra.mxu0 %v553
    %577 = vmatprep.subr.bf16.mxu0 0
    %578 = vmatpush1.bf16.msra.mxu0 %v554
    %579 = vmatprep.subr.bf16.mxu0 0
    %580 = vmatpush1.bf16.msra.mxu0 0
    %581 = vmatprep.subr.bf16.mxu0 0
    %582 = vmatpush1.bf16.msra.mxu0 0
    %583 = vmatprep.subr.bf16.mxu0 0
    %584 = vmatpush1.bf16.msra.mxu0 0
    %585 = vmatprep.subr.bf16.mxu0 0
    %586 = vmatpush1.bf16.msra.mxu0 0
    %587 = vmatprep.subr.bf16.mxu0 0
    %588 = vmatpush1.bf16.msra.mxu0 0
    %589 = vmatprep.subr.bf16.mxu0 0
    %590 = vmatpush1.bf16.msra.mxu0 0
    %591 = vmatprep.subr.bf16.mxu0 0
    %592 = vmatpush1.bf16.msra.mxu0 0
    %593 = vmatprep.subr.bf16.mxu0 0
    %594 = vmatpush1.bf16.msra.mxu0 0
    %595 = vmatprep.mubr.bf16.mxu0 0
    %596 = vmatmul.mubr.bf16.gmra.mrb[0].mxu0 %v491
    %v597 = vpop.f32.mrb[0].mxu0
    %v598 = vadd.f32 %v513, %v597
    %v599 = vpop.f32.mrb[0].mxu0
    %v600 = vpop.f32.mrb[0].mxu0
    %v601 = vadd.f32 %v513, %v600
    %v602 = vpop.f32.mrb[0].mxu0
    %603 = vdwg.mxu0
    %v604 = vmax.f32 %v598, 0.0
    %v605 = vmax.f32 %v601, 0.0
    %v606 = vpack.c.bf16 %v605, %v604
    %v607 = vld [vmem:[#allocation14] sm:$0xff]
    %v608 = vld [vmem:[#allocation14 + $0x8] sm:$0xff]
    %v609 = vld [vmem:[#allocation14 + $0x10] sm:$0xff]
    %v610 = vld [vmem:[#allocation14 + $0x18] sm:$0xff]
    %v611 = vld [vmem:[#allocation14 + $0x20] sm:$0xff]
    %v612 = vld [vmem:[#allocation14 + $0x28] sm:$0xff]
    %v613 = vld [vmem:[#allocation14 + $0x30] sm:$0xff]
    %v614 = vld [vmem:[#allocation14 + $0x38] sm:$0xff]
    %v615 = vld [vmem:[#allocation14 + $0x40] sm:$0xff]
    %v616 = vld [vmem:[#allocation14 + $0x48] sm:$0xff]
    %v617 = vld [vmem:[#allocation14 + $0x50] sm:$0xff]
    %v618 = vld [vmem:[#allocation14 + $0x58] sm:$0xff]
    %v619 = vld [vmem:[#allocation14 + $0x60] sm:$0xff]
    %v620 = vld [vmem:[#allocation14 + $0x68] sm:$0xff]
    %v621 = vld [vmem:[#allocation14 + $0x70] sm:$0xff]
    %v622 = vld [vmem:[#allocation14 + $0x78] sm:$0xff]
    %v623 = vld [vmem:[#allocation16] sm:$0x3]
    %v625 = vlaneseq
    %v626 = vshrl.u32 %v625, 7
    %v627 = vsub.s32 0, %v626
    %v628 = vrot.slane %v623, %v627
    %v629 = vlaneseq
    %v630 = vshrl.u32 %v629, 7
    %v631 = vsub.s32 1, %v630
    %v632 = vrot.slane %v623, %v631
    %v651 = vunpack.c.l.b16 %v607
    %v652 = vunpack.c.h.b16 %v607
    %v653 = vunpack.c.l.b16 %v608
    %v654 = vunpack.c.h.b16 %v608
    %v655 = vunpack.c.l.b16 %v609
    %v656 = vunpack.c.h.b16 %v609
    %v657 = vunpack.c.l.b16 %v610
    %v658 = vunpack.c.h.b16 %v610
    %v659 = vunpack.c.l.b16 %v611
    %v660 = vunpack.c.h.b16 %v611
    %v661 = vunpack.c.l.b16 %v612
    %v662 = vunpack.c.h.b16 %v612
    %v663 = vunpack.c.l.b16 %v613
    %v664 = vunpack.c.h.b16 %v613
    %v665 = vunpack.c.l.b16 %v614
    %v666 = vunpack.c.h.b16 %v614
    %v667 = vunpack.c.l.b16 %v615
    %v668 = vunpack.c.h.b16 %v615
    %v669 = vunpack.c.l.b16 %v616
    %v670 = vunpack.c.h.b16 %v616
    %v671 = vunpack.c.l.b16 %v617
    %v672 = vunpack.c.h.b16 %v617
    %v673 = vunpack.c.l.b16 %v618
    %v674 = vunpack.c.h.b16 %v618
    %v675 = vunpack.c.l.b16 %v619
    %v676 = vunpack.c.h.b16 %v619
    %v677 = vunpack.c.l.b16 %v620
    %v678 = vunpack.c.h.b16 %v620
    %v679 = vunpack.c.l.b16 %v621
    %v680 = vunpack.c.h.b16 %v621
    %v681 = vunpack.c.l.b16 %v622
    %v682 = vunpack.c.h.b16 %v622
    %v683 = vpack.c.b16 %v653, %v651
    %v684 = vpack.c.b16 %v654, %v652
    %v685 = vpack.c.b16 %v657, %v655
    %v686 = vpack.c.b16 %v658, %v656
    %v687 = vpack.c.b16 %v661, %v659
    %v688 = vpack.c.b16 %v662, %v660
    %v689 = vpack.c.b16 %v665, %v663
    %v690 = vpack.c.b16 %v666, %v664
    %v691 = vpack.c.b16 %v669, %v667
    %v692 = vpack.c.b16 %v670, %v668
    %v693 = vpack.c.b16 %v673, %v671
    %v694 = vpack.c.b16 %v674, %v672
    %v695 = vpack.c.b16 %v677, %v675
    %v696 = vpack.c.b16 %v678, %v676
    %v697 = vpack.c.b16 %v681, %v679
    %v698 = vpack.c.b16 %v682, %v680
    %715 = vmatprep.subr.bf16.mxu0 %v684
    %716 = vmatpush1.bf16.msra.mxu0 %v683
    %717 = vmatprep.subr.bf16.mxu0 %v686
    %718 = vmatpush1.bf16.msra.mxu0 %v685
    %719 = vmatprep.subr.bf16.mxu0 %v688
    %720 = vmatpush1.bf16.msra.mxu0 %v687
    %721 = vmatprep.subr.bf16.mxu0 %v690
    %722 = vmatpush1.bf16.msra.mxu0 %v689
    %723 = vmatprep.subr.bf16.mxu0 %v692
    %724 = vmatpush1.bf16.msra.mxu0 %v691
    %725 = vmatprep.subr.bf16.mxu0 %v694
    %726 = vmatpush1.bf16.msra.mxu0 %v693
    %727 = vmatprep.subr.bf16.mxu0 %v696
    %728 = vmatpush1.bf16.msra.mxu0 %v695
    %729 = vmatprep.subr.bf16.mxu0 %v698
    %730 = vmatpush1.bf16.msra.mxu0 %v697
    %731 = vmatprep.subr.bf16.mxu0 0
    %732 = vmatpush1.bf16.msra.mxu0 0
    %733 = vmatprep.subr.bf16.mxu0 0
    %734 = vmatpush1.bf16.msra.mxu0 0
    %735 = vmatprep.subr.bf16.mxu0 0
    %736 = vmatpush1.bf16.msra.mxu0 0
    %737 = vmatprep.subr.bf16.mxu0 0
    %738 = vmatpush1.bf16.msra.mxu0 0
    %739 = vmatprep.subr.bf16.mxu0 0
    %740 = vmatpush1.bf16.msra.mxu0 0
    %741 = vmatprep.subr.bf16.mxu0 0
    %742 = vmatpush1.bf16.msra.mxu0 0
    %743 = vmatprep.subr.bf16.mxu0 0
    %744 = vmatpush1.bf16.msra.mxu0 0
    %745 = vmatprep.subr.bf16.mxu0 0
    %746 = vmatpush1.bf16.msra.mxu0 0
    %747 = vmatprep.mubr.bf16.mxu0 0
    %748 = vmatmul.mubr.bf16.gmra.mrb[0].mxu0 %v606
    %v749 = vpop.f32.mrb[0].mxu0
    %v750 = vadd.f32 %v628, %v749
    %v751 = vpop.f32.mrb[0].mxu0
    %v752 = vadd.f32 %v632, %v751
    %v753 = vpop.f32.mrb[0].mxu0
    %v754 = vadd.f32 %v628, %v753
    %v755 = vpop.f32.mrb[0].mxu0
    %v756 = vadd.f32 %v632, %v755
    %757 = vdwg.mxu0
    %v758 = vxor.u32 %v750, 2147483648
    %v759 = vxor.u32 %v752, 2147483648
    %v760 = vxor.u32 %v754, 2147483648
    %v761 = vxor.u32 %v756, 2147483648
    %v762 = vmul.f32 %v758, 1.442695
    %v763 = vpow.pop %v762
    %v764 = vmul.f32 %v759, 1.442695
    %v765 = vpow.pop %v764
    %v766 = vmul.f32 %v760, 1.442695
    %v767 = vpow.pop %v766
    %v768 = vmul.f32 %v761, 1.442695
    %v769 = vpow.pop %v768
    %v770 = vadd.f32 %v763, 1.0
    %v771 = vadd.f32 %v765, 1.0
    %v772 = vadd.f32 %v767, 1.0
    %v773 = vadd.f32 %v769, 1.0
    %v774 = vrcp.pop %v770
    %v775 = vmul.f32 1.0, %v774
    %v776 = vrcp.pop %v771
    %v777 = vmul.f32 1.0, %v776
    %v778 = vrcp.pop %v772
    %v779 = vmul.f32 1.0, %v778
    %v780 = vrcp.pop %v773
    %v781 = vmul.f32 1.0, %v780
    %782 = vst [vmem:[#allocation17] sm:$0xff] %v775
    %783 = vst [vmem:[#allocation17 + $0x8] sm:$0xff] %v777
    %784 = vst [vmem:[#allocation17 + $0x10] sm:$0xff] %v779
    %785 = vst [vmem:[#allocation17 + $0x18] sm:$0xff] %v781
    // Predicated region
    $region74: #{tpu_custom_call.1} parent=1 // pred_check
      _
    $region75: #{tpu_custom_call.1} parent=1 // pred_check_branch
      %787 = sbr.rel (0) target = $region77
    $region76: #{tpu_custom_call.1} parent=1 // pred_region
      %s789 = ssub.s32 512, 512
      %790 = vsyncadd [#allocation4], %s789
      %s791 = sshll.u32 [#allocation17], 4
      %s792 = int_to_ptr.vmem [resolvable:$true] %s791
      %797 = dma.vmem_to_hbm [thread:$0]  %s792, 512, %s9, [#allocation4], 256, 256, 16
    $region77: #{tpu_custom_call.1} parent=1 // pred_fallthru
      _
    // Predicated region
    $region78: #{tpu_custom_call.1} parent=1 // pred_check
      _
    $region79: #{tpu_custom_call.1} parent=1 // pred_check_branch
      %799 = sbr.rel (0) target = $region81
    $region80: #{tpu_custom_call.1} parent=1 // pred_region
      %800 = dma.done [#allocation4], 512
    $region81: #{tpu_custom_call.1} parent=1 // pred_fallthru
      _
    %801 = vsyncpa [#allocation3], 1
    %802 = vsyncpa [#allocation6], 1
    %803 = vsyncpa [#allocation9], 1
    %804 = vsyncpa [#allocation12], 1
    %805 = vsyncpa [#allocation15], 1
    %806 = vsyncpa [#allocation4], 1

// kernel: tpu_custom_call.1
$region0: #{tpu_custom_call.1}
  #allocation0 [shape = 'u32[]', space=smem, size = 0x4, offset = 0x4, fixed_abs, tag = 'smem constant byte address 0x4 - core index']
  #allocation1 [shape = 'u32[144,128]{1,0:T(1,128)}', space=vmem, size = 0x12000, scoped, tag = 'internal scratch']
  %s0 = inlined_call_operand.hbm [shape: bf16[16,128], index: 0, kind: input, shape index: {}]
  %s1 = inlined_call_operand.hbm [shape: bf16[128,256], index: 1, kind: input, shape index: {}]
  %s2 = inlined_call_operand.hbm [shape: f32[1,256], index: 2, kind: input, shape index: {}]
  %s3 = inlined_call_operand.hbm [shape: bf16[256,128], index: 3, kind: input, shape index: {}]
  %s4 = inlined_call_operand.hbm [shape: f32[1,128], index: 4, kind: input, shape index: {}]
  %s5 = inlined_call_operand.hbm [shape: bf16[128,128], index: 5, kind: input, shape index: {}]
  %s6 = inlined_call_operand.hbm [shape: f32[1,128], index: 6, kind: input, shape index: {}]
  %s7 = inlined_call_operand.hbm [shape: bf16[128,256], index: 7, kind: input, shape index: {}]
  %s8 = inlined_call_operand.hbm [shape: f32[1,256], index: 8, kind: input, shape index: {}]
  %s9 = inlined_call_operand.hbm [shape: f32[16,256], index: 9, kind: output, shape index: {}]
  %s10 = sld [smem:[#allocation0]]
  $region82: #{tpu_custom_call.1} parent=0
    _
  %s12 = ssub.s32 1, %s10
  %s13 = scalar_select 0, %s12, %s10
  $region1: #{tpu_custom_call.1} parent=0
    #allocation2 [shape = 'u8[4096]{0}', space=vmem, size = 0x1000, scoped, tag = 'input window, operand 0, single buffered']
    #allocation3 [shape = 's32[1]{0}', space=sflag, size = 0x4, scoped, tag = 'scoped memory for tpu_custom_call.1']
    #allocation4 [shape = 's32[1]{0}', space=sflag, size = 0x4, scoped, tag = 'scoped memory for tpu_custom_call.1']
    #allocation5 [shape = 'u8[65536]{0}', space=vmem, size = 0x10000, scoped, tag = 'input window, operand 1, single buffered']
    #allocation6 [shape = 's32[1]{0}', space=sflag, size = 0x4, scoped, tag = 'scoped memory for tpu_custom_call.1']
    #allocation7 [shape = 'u8[1024]{0}', space=vmem, size = 0x400, scoped, tag = 'input window, operand 2, single buffered']
    #allocation8 [shape = 'u8[65536]{0}', space=vmem, size = 0x10000, scoped, tag = 'input window, operand 3, single buffered']
    #allocation9 [shape = 's32[1]{0}', space=sflag, size = 0x4, scoped, tag = 'scoped memory for tpu_custom_call.1']
    #allocation10 [shape = 'u8[512]{0}', space=vmem, size = 0x400, scoped, tag = 'input window, operand 4, single buffered']
    #allocation11 [shape = 'u8[32768]{0}', space=vmem, size = 0x8000, scoped, tag = 'input window, operand 5, single buffered']
    #allocation12 [shape = 's32[1]{0}', space=sflag, size = 0x4, scoped, tag = 'scoped memory for tpu_custom_call.1']
    #allocation13 [shape = 'u8[512]{0}', space=vmem, size = 0x400, scoped, tag = 'input window, operand 6, single buffered']
    #allocation14 [shape = 'u8[65536]{0}', space=vmem, size = 0x10000, scoped, tag = 'input window, operand 7, single buffered']
    #allocation15 [shape = 's32[1]{0}', space=sflag, size = 0x4, scoped, tag = 'scoped memory for tpu_custom_call.1']
    #allocation16 [shape = 'u8[1024]{0}', space=vmem, size = 0x400, scoped, tag = 'input window, operand 8, single buffered']
    #allocation17 [shape = 'u8[16384]{0}', space=vmem, size = 0x4000, scoped, tag = 'output window, operand 0, single buffered']
    %14 = vsyncpa [#allocation3], 0
    %15 = vsyncpa [#allocation6], 0
    %16 = vsyncpa [#allocation9], 0
    %17 = vsyncpa [#allocation12], 0
    %18 = vsyncpa [#allocation15], 0
    %19 = vsyncpa [#allocation4], 0
    // Predicated region
    $region2: #{tpu_custom_call.1} parent=1 // pred_check
      _
    $region3: #{tpu_custom_call.1} parent=1 // pred_check_branch
      %21 = sbr.rel (0) target = $region5
    $region4: #{tpu_custom_call.1} parent=1 // pred_region
      %s23 = ssub.s32 128, 128
      %24 = vsyncadd [#allocation3], %s23
      %s25 = sshll.u32 [#allocation2], 4
      %s26 = int_to_ptr.vmem [resolvable:$true] %s25
      %31 = dma.hbm_to_vmem [thread:$0]  %s0, 128, %s26, [#allocation3], 64, 64, 4
    $region5: #{tpu_custom_call.1} parent=1 // pred_fallthru
      _
    // Predicated region
    $region6: #{tpu_custom_call.1} parent=1 // pred_check
      _
    $region7: #{tpu_custom_call.1} parent=1 // pred_check_branch
      %33 = sbr.rel (0) target = $region9
    $region8: #{tpu_custom_call.1} parent=1 // pred_region
      %s35 = ssub.s32 2048, 2048
      %36 = vsyncadd [#allocation6], %s35
      %s37 = sshll.u32 [#allocation5], 4
      %s38 = int_to_ptr.vmem [resolvable:$true] %s37
      %43 = dma.hbm_to_vmem [thread:$0]  %s1, 2048, %s38, [#allocation6], 128, 128, 8
    $region9: #{tpu_custom_call.1} parent=1 // pred_fallthru
      _
    // Predicated region
    $region10: #{tpu_custom_call.1} parent=1 // pred_check
      _
    $region11: #{tpu_custom_call.1} parent=1 // pred_check_branch
      %45 = sbr.rel (0) target = $region13
    $region12: #{tpu_custom_call.1} parent=1 // pred_region
      %s47 = ssub.s32 32, 32
      %48 = vsyncadd [#allocation6], %s47
      %s50 = sshll.u32 [#allocation7], 4
      %s51 = int_to_ptr.vmem [resolvable:$true] %s50
      %53 = dma.hbm_to_vmem [thread:$0]  %s2, 32, %s51, [#allocation6]
    $region13: #{tpu_custom_call.1} parent=1 // pred_fallthru
      _
    // Predicated region
    $region14: #{tpu_custom_call.1} parent=1 // pred_check
      _
    $region15: #{tpu_custom_call.1} parent=1 // pred_check_branch
      %55 = sbr.rel (0) target = $region17
    $region16: #{tpu_custom_call.1} parent=1 // pred_region
      %s57 = ssub.s32 2048, 2048
      %58 = vsyncadd [#allocation9], %s57
      %s59 = sshll.u32 [#allocation8], 4
      %s60 = int_to_ptr.vmem [resolvable:$true] %s59
      %65 = dma.hbm_to_vmem [thread:$0]  %s3, 2048, %s60, [#allocation9], 64, 64, 4
    $region17: #{tpu_custom_call.1} parent=1 // pred_fallthru
      _
    // Predicated region
    $region18: #{tpu_custom_call.1} parent=1 // pred_check
      _
    $region19: #{tpu_custom_call.1} parent=1 // pred_check_branch
      %67 = sbr.rel (0) target = $region21
    $region20: #{tpu_custom_call.1} parent=1 // pred_region
      %s69 = ssub.s32 16, 16
      %70 = vsyncadd [#allocation9], %s69
      %s72 = sshll.u32 [#allocation10], 4
      %s73 = int_to_ptr.vmem [resolvable:$true] %s72
      %75 = dma.hbm_to_vmem [thread:$0]  %s4, 16, %s73, [#allocation9]
    $region21: #{tpu_custom_call.1} parent=1 // pred_fallthru
      _
    // Predicated region
    $region22: #{tpu_custom_call.1} parent=1 // pred_check
      _
    $region23: #{tpu_custom_call.1} parent=1 // pred_check_branch
      %77 = sbr.rel (0) target = $region25
    $region24: #{tpu_custom_call.1} parent=1 // pred_region
      %s79 = ssub.s32 1024, 1024
      %80 = vsyncadd [#allocation12], %s79
      %s81 = sshll.u32 [#allocation11], 4
      %s82 = int_to_ptr.vmem [resolvable:$true] %s81
      %87 = dma.hbm_to_vmem [thread:$0]  %s5, 1024, %s82, [#allocation12], 64, 64, 4
    $region25: #{tpu_custom_call.1} parent=1 // pred_fallthru
      _
    // Predicated region
    $region26: #{tpu_custom_call.1} parent=1 // pred_check
      _
    $region27: #{tpu_custom_call.1} parent=1 // pred_check_branch
      %89 = sbr.rel (0) target = $region29
    $region28: #{tpu_custom_call.1} parent=1 // pred_region
      %s91 = ssub.s32 16, 16
      %92 = vsyncadd [#allocation12], %s91
      %s94 = sshll.u32 [#allocation13], 4
      %s95 = int_to_ptr.vmem [resolvable:$true] %s94
      %97 = dma.hbm_to_vmem [thread:$0]  %s6, 16, %s95, [#allocation12]
    $region29: #{tpu_custom_call.1} parent=1 // pred_fallthru
      _
    // Predicated region
    $region30: #{tpu_custom_call.1} parent=1 // pred_check
      _
    $region31: #{tpu_custom_call.1} parent=1 // pred_check_branch
      %99 = sbr.rel (0) target = $region33
    $region32: #{tpu_custom_call.1} parent=1 // pred_region
      %s101 = ssub.s32 2048, 2048
      %102 = vsyncadd [#allocation15], %s101
      %s103 = sshll.u32 [#allocation14], 4
      %s104 = int_to_ptr.vmem [resolvable:$true] %s103
      %109 = dma.hbm_to_vmem [thread:$0]  %s7, 2048, %s104, [#allocation15], 128, 128, 8
    $region33: #{tpu_custom_call.1} parent=1 // pred_fallthru
      _
    // Predicated region
    $region34: #{tpu_custom_call.1} parent=1 // pred_check
      _
    $region35: #{tpu_custom_call.1} parent=1 // pred_check_branch
      %111 = sbr.rel (0) target = $region37
    $region36: #{tpu_custom_call.1} parent=1 // pred_region
      %s113 = ssub.s32 32, 32
      %114 = vsyncadd [#allocation15], %s113
      %s116 = sshll.u32 [#allocation16], 4
      %s117 = int_to_ptr.vmem [resolvable:$true] %s116
      %119 = dma.hbm_to_vmem [thread:$0]  %s8, 32, %s117, [#allocation15]
    $region37: #{tpu_custom_call.1} parent=1 // pred_fallthru
      _
    // Predicated region
    $region38: #{tpu_custom_call.1} parent=1 // pred_check
      _
    $region39: #{tpu_custom_call.1} parent=1 // pred_check_branch
      %121 = sbr.rel (0) target = $region41
    $region40: #{tpu_custom_call.1} parent=1 // pred_region
      %122 = dma.done [#allocation3], 128
    $region41: #{tpu_custom_call.1} parent=1 // pred_fallthru
      _
    // Predicated region
    $region42: #{tpu_custom_call.1} parent=1 // pred_check
      _
    $region43: #{tpu_custom_call.1} parent=1 // pred_check_branch
      %124 = sbr.rel (0) target = $region45
    $region44: #{tpu_custom_call.1} parent=1 // pred_region
      %125 = dma.done [#allocation6], 2048
    $region45: #{tpu_custom_call.1} parent=1 // pred_fallthru
      _
    // Predicated region
    $region46: #{tpu_custom_call.1} parent=1 // pred_check
      _
    $region47: #{tpu_custom_call.1} parent=1 // pred_check_branch
      %127 = sbr.rel (0) target = $region49
    $region48: #{tpu_custom_call.1} parent=1 // pred_region
      %128 = dma.done [#allocation6], 32
    $region49: #{tpu_custom_call.1} parent=1 // pred_fallthru
      _
    // Predicated region
    $region50: #{tpu_custom_call.1} parent=1 // pred_check
      _
    $region51: #{tpu_custom_call.1} parent=1 // pred_check_branch
      %130 = sbr.rel (0) target = $region53
    $region52: #{tpu_custom_call.1} parent=1 // pred_region
      %131 = dma.done [#allocation9], 2048
    $region53: #{tpu_custom_call.1} parent=1 // pred_fallthru
      _
    // Predicated region
    $region54: #{tpu_custom_call.1} parent=1 // pred_check
      _
    $region55: #{tpu_custom_call.1} parent=1 // pred_check_branch
      %133 = sbr.rel (0) target = $region57
    $region56: #{tpu_custom_call.1} parent=1 // pred_region
      %134 = dma.done [#allocation9], 16
    $region57: #{tpu_custom_call.1} parent=1 // pred_fallthru
      _
    // Predicated region
    $region58: #{tpu_custom_call.1} parent=1 // pred_check
      _
    $region59: #{tpu_custom_call.1} parent=1 // pred_check_branch
      %136 = sbr.rel (0) target = $region61
    $region60: #{tpu_custom_call.1} parent=1 // pred_region
      %137 = dma.done [#allocation12], 1024
    $region61: #{tpu_custom_call.1} parent=1 // pred_fallthru
      _
    // Predicated region
    $region62: #{tpu_custom_call.1} parent=1 // pred_check
      _
    $region63: #{tpu_custom_call.1} parent=1 // pred_check_branch
      %139 = sbr.rel (0) target = $region65
    $region64: #{tpu_custom_call.1} parent=1 // pred_region
      %140 = dma.done [#allocation12], 16
    $region65: #{tpu_custom_call.1} parent=1 // pred_fallthru
      _
    // Predicated region
    $region66: #{tpu_custom_call.1} parent=1 // pred_check
      _
    $region67: #{tpu_custom_call.1} parent=1 // pred_check_branch
      %142 = sbr.rel (0) target = $region69
    $region68: #{tpu_custom_call.1} parent=1 // pred_region
      %143 = dma.done [#allocation15], 2048
    $region69: #{tpu_custom_call.1} parent=1 // pred_fallthru
      _
    // Predicated region
    $region70: #{tpu_custom_call.1} parent=1 // pred_check
      _
    $region71: #{tpu_custom_call.1} parent=1 // pred_check_branch
      %145 = sbr.rel (0) target = $region73
    $region72: #{tpu_custom_call.1} parent=1 // pred_region
      %146 = dma.done [#allocation15], 32
    $region73: #{tpu_custom_call.1} parent=1 // pred_fallthru
      _
    %v148 = vld [vmem:[#allocation2] sm:$0xf]
    %v149 = vld [vmem:[#allocation2 + $0x4] sm:$0xf]
    %v150 = vld [vmem:[#allocation5] sm:$0xff]
    %v151 = vld [vmem:[#allocation5 + $0x8] sm:$0xff]
    %v152 = vld [vmem:[#allocation5 + $0x10] sm:$0xff]
    %v153 = vld [vmem:[#allocation5 + $0x18] sm:$0xff]
    %v154 = vld [vmem:[#allocation5 + $0x20] sm:$0xff]
    %v155 = vld [vmem:[#allocation5 + $0x28] sm:$0xff]
    %v156 = vld [vmem:[#allocation5 + $0x30] sm:$0xff]
    %v157 = vld [vmem:[#allocation5 + $0x38] sm:$0xff]
    %v158 = vld [vmem:[#allocation5 + $0x40] sm:$0xff]
    %v159 = vld [vmem:[#allocation5 + $0x48] sm:$0xff]
    %v160 = vld [vmem:[#allocation5 + $0x50] sm:$0xff]
    %v161 = vld [vmem:[#allocation5 + $0x58] sm:$0xff]
    %v162 = vld [vmem:[#allocation5 + $0x60] sm:$0xff]
    %v163 = vld [vmem:[#allocation5 + $0x68] sm:$0xff]
    %v164 = vld [vmem:[#allocation5 + $0x70] sm:$0xff]
    %v165 = vld [vmem:[#allocation5 + $0x78] sm:$0xff]
    %v166 = vld [vmem:[#allocation7] sm:$0x3]
    %v168 = vlaneseq
    %v169 = vshrl.u32 %v168, 7
    %v170 = vsub.s32 0, %v169
    %v171 = vrot.slane %v166, %v170
    %v172 = vlaneseq
    %v173 = vshrl.u32 %v172, 7
    %v174 = vsub.s32 1, %v173
    %v175 = vrot.slane %v166, %v174
    %v180 = vunpack.c.l.b16 %v148
    %v181 = vunpack.c.l.b16 %v149
    %v182 = vpack.c.b16 %v181, %v180
    %v200 = vunpack.c.l.b16 %v150
    %v201 = vunpack.c.h.b16 %v150
    %v202 = vunpack.c.l.b16 %v151
    %v203 = vunpack.c.h.b16 %v151
    %v204 = vunpack.c.l.b16 %v152
    %v205 = vunpack.c.h.b16 %v152
    %v206 = vunpack.c.l.b16 %v153
    %v207 = vunpack.c.h.b16 %v153
    %v208 = vunpack.c.l.b16 %v154
    %v209 = vunpack.c.h.b16 %v154
    %v210 = vunpack.c.l.b16 %v155
    %v211 = vunpack.c.h.b16 %v155
    %v212 = vunpack.c.l.b16 %v156
    %v213 = vunpack.c.h.b16 %v156
    %v214 = vunpack.c.l.b16 %v157
    %v215 = vunpack.c.h.b16 %v157
    %v216 = vunpack.c.l.b16 %v158
    %v217 = vunpack.c.h.b16 %v158
    %v218 = vunpack.c.l.b16 %v159
    %v219 = vunpack.c.h.b16 %v159
    %v220 = vunpack.c.l.b16 %v160
    %v221 = vunpack.c.h.b16 %v160
    %v222 = vunpack.c.l.b16 %v161
    %v223 = vunpack.c.h.b16 %v161
    %v224 = vunpack.c.l.b16 %v162
    %v225 = vunpack.c.h.b16 %v162
    %v226 = vunpack.c.l.b16 %v163
    %v227 = vunpack.c.h.b16 %v163
    %v228 = vunpack.c.l.b16 %v164
    %v229 = vunpack.c.h.b16 %v164
    %v230 = vunpack.c.l.b16 %v165
    %v231 = vunpack.c.h.b16 %v165
    %v232 = vpack.c.b16 %v202, %v200
    %v233 = vpack.c.b16 %v203, %v201
    %v234 = vpack.c.b16 %v206, %v204
    %v235 = vpack.c.b16 %v207, %v205
    %v236 = vpack.c.b16 %v210, %v208
    %v237 = vpack.c.b16 %v211, %v209
    %v238 = vpack.c.b16 %v214, %v212
    %v239 = vpack.c.b16 %v215, %v213
    %v240 = vpack.c.b16 %v218, %v216
    %v241 = vpack.c.b16 %v219, %v217
    %v242 = vpack.c.b16 %v222, %v220
    %v243 = vpack.c.b16 %v223, %v221
    %v244 = vpack.c.b16 %v226, %v224
    %v245 = vpack.c.b16 %v227, %v225
    %v246 = vpack.c.b16 %v230, %v228
    %v247 = vpack.c.b16 %v231, %v229
    %264 = vmatprep.subr.bf16.mxu0 %v233
    %265 = vmatpush1.bf16.msra.mxu0 %v232
    %266 = vmatprep.subr.bf16.mxu0 %v235
    %267 = vmatpush1.bf16.msra.mxu0 %v234
    %268 = vmatprep.subr.bf16.mxu0 %v237
    %269 = vmatpush1.bf16.msra.mxu0 %v236
    %270 = vmatprep.subr.bf16.mxu0 %v239
    %271 = vmatpush1.bf16.msra.mxu0 %v238
    %272 = vmatprep.subr.bf16.mxu0 %v241
    %273 = vmatpush1.bf16.msra.mxu0 %v240
    %274 = vmatprep.subr.bf16.mxu0 %v243
    %275 = vmatpush1.bf16.msra.mxu0 %v242
    %276 = vmatprep.subr.bf16.mxu0 %v245
    %277 = vmatpush1.bf16.msra.mxu0 %v244
    %278 = vmatprep.subr.bf16.mxu0 %v247
    %279 = vmatpush1.bf16.msra.mxu0 %v246
    %280 = vmatprep.subr.bf16.mxu0 0
    %281 = vmatpush1.bf16.msra.mxu0 0
    %282 = vmatprep.subr.bf16.mxu0 0
    %283 = vmatpush1.bf16.msra.mxu0 0
    %284 = vmatprep.subr.bf16.mxu0 0
    %285 = vmatpush1.bf16.msra.mxu0 0
    %286 = vmatprep.subr.bf16.mxu0 0
    %287 = vmatpush1.bf16.msra.mxu0 0
    %288 = vmatprep.subr.bf16.mxu0 0
    %289 = vmatpush1.bf16.msra.mxu0 0
    %290 = vmatprep.subr.bf16.mxu0 0
    %291 = vmatpush1.bf16.msra.mxu0 0
    %292 = vmatprep.subr.bf16.mxu0 0
    %293 = vmatpush1.bf16.msra.mxu0 0
    %294 = vmatprep.subr.bf16.mxu0 0
    %295 = vmatpush1.bf16.msra.mxu0 0
    %296 = vmatprep.mubr.bf16.mxu0 0
    %297 = vmatmul.mubr.bf16.gmra.mrb[0].mxu0 %v182
    %v298 = vpop.f32.mrb[0].mxu0
    %v299 = vadd.f32 %v171, %v298
    %v300 = vpop.f32.mrb[0].mxu0
    %v301 = vadd.f32 %v175, %v300
    %v302 = vpop.f32.mrb[0].mxu0
    %v303 = vadd.f32 %v171, %v302
    %v304 = vpop.f32.mrb[0].mxu0
    %v305 = vadd.f32 %v175, %v304
    %306 = vdwg.mxu0
    %v307 = vmax.f32 %v299, 0.0
    %v308 = vmax.f32 %v301, 0.0
    %v309 = vmax.f32 %v303, 0.0
    %v310 = vmax.f32 %v305, 0.0
    %v311 = vpack.c.bf16 %v309, %v307
    %v312 = vpack.c.bf16 %v310, %v308
    %v313 = vld [vmem:[#allocation8] sm:$0xf]
    %v314 = vld [vmem:[#allocation8 + $0x4] sm:$0xf]
    %v315 = vld [vmem:[#allocation8 + $0x8] sm:$0xf]
    %v316 = vld [vmem:[#allocation8 + $0xc] sm:$0xf]
    %v317 = vld [vmem:[#allocation8 + $0x10] sm:$0xf]
    %v318 = vld [vmem:[#allocation8 + $0x14] sm:$0xf]
    %v319 = vld [vmem:[#allocation8 + $0x18] sm:$0xf]
    %v320 = vld [vmem:[#allocation8 + $0x1c] sm:$0xf]
    %v321 = vld [vmem:[#allocation8 + $0x20] sm:$0xf]
    %v322 = vld [vmem:[#allocation8 + $0x24] sm:$0xf]
    %v323 = vld [vmem:[#allocation8 + $0x28] sm:$0xf]
    %v324 = vld [vmem:[#allocation8 + $0x2c] sm:$0xf]
    %v325 = vld [vmem:[#allocation8 + $0x30] sm:$0xf]
    %v326 = vld [vmem:[#allocation8 + $0x34] sm:$0xf]
    %v327 = vld [vmem:[#allocation8 + $0x38] sm:$0xf]
    %v328 = vld [vmem:[#allocation8 + $0x3c] sm:$0xf]
    %v329 = vld [vmem:[#allocation8 + $0x40] sm:$0xf]
    %v330 = vld [vmem:[#allocation8 + $0x44] sm:$0xf]
    %v331 = vld [vmem:[#allocation8 + $0x48] sm:$0xf]
    %v332 = vld [vmem:[#allocation8 + $0x4c] sm:$0xf]
    %v333 = vld [vmem:[#allocation8 + $0x50] sm:$0xf]
    %v334 = vld [vmem:[#allocation8 + $0x54] sm:$0xf]
    %v335 = vld [vmem:[#allocation8 + $0x58] sm:$0xf]
    %v336 = vld [vmem:[#allocation8 + $0x5c] sm:$0xf]
    %v337 = vld [vmem:[#allocation8 + $0x60] sm:$0xf]
    %v338 = vld [vmem:[#allocation8 + $0x64] sm:$0xf]
    %v339 = vld [vmem:[#allocation8 + $0x68] sm:$0xf]
    %v340 = vld [vmem:[#allocation8 + $0x6c] sm:$0xf]
    %v341 = vld [vmem:[#allocation8 + $0x70] sm:$0xf]
    %v342 = vld [vmem:[#allocation8 + $0x74] sm:$0xf]
    %v343 = vld [vmem:[#allocation8 + $0x78] sm:$0xf]
    %v344 = vld [vmem:[#allocation8 + $0x7c] sm:$0xf]
    %v345 = vld [vmem:[#allocation10] sm:$0x1]
    %v347 = vlaneseq
    %v348 = vshrl.u32 %v347, 7
    %v349 = vsub.s32 0, %v348
    %v350 = vrot.slane %v345, %v349
    %v384 = vunpack.c.l.b16 %v313
    %v385 = vunpack.c.l.b16 %v314
    %v386 = vunpack.c.l.b16 %v315
    %v387 = vunpack.c.l.b16 %v316
    %v388 = vunpack.c.l.b16 %v317
    %v389 = vunpack.c.l.b16 %v318
    %v390 = vunpack.c.l.b16 %v319
    %v391 = vunpack.c.l.b16 %v320
    %v392 = vunpack.c.l.b16 %v321
    %v393 = vunpack.c.l.b16 %v322
    %v394 = vunpack.c.l.b16 %v323
    %v395 = vunpack.c.l.b16 %v324
    %v396 = vunpack.c.l.b16 %v325
    %v397 = vunpack.c.l.b16 %v326
    %v398 = vunpack.c.l.b16 %v327
    %v399 = vunpack.c.l.b16 %v328
    %v400 = vunpack.c.l.b16 %v329
    %v401 = vunpack.c.l.b16 %v330
    %v402 = vunpack.c.l.b16 %v331
    %v403 = vunpack.c.l.b16 %v332
    %v404 = vunpack.c.l.b16 %v333
    %v405 = vunpack.c.l.b16 %v334
    %v406 = vunpack.c.l.b16 %v335
    %v407 = vunpack.c.l.b16 %v336
    %v408 = vunpack.c.l.b16 %v337
    %v409 = vunpack.c.l.b16 %v338
    %v410 = vunpack.c.l.b16 %v339
    %v411 = vunpack.c.l.b16 %v340
    %v412 = vunpack.c.l.b16 %v341
    %v413 = vunpack.c.l.b16 %v342
    %v414 = vunpack.c.l.b16 %v343
    %v415 = vunpack.c.l.b16 %v344
    %v416 = vpack.c.b16 %v385, %v384
    %v417 = vpack.c.b16 %v387, %v386
    %v418 = vpack.c.b16 %v389, %v388
    %v419 = vpack.c.b16 %v391, %v390
    %v420 = vpack.c.b16 %v393, %v392
    %v421 = vpack.c.b16 %v395, %v394
    %v422 = vpack.c.b16 %v397, %v396
    %v423 = vpack.c.b16 %v399, %v398
    %v424 = vpack.c.b16 %v401, %v400
    %v425 = vpack.c.b16 %v403, %v402
    %v426 = vpack.c.b16 %v405, %v404
    %v427 = vpack.c.b16 %v407, %v406
    %v428 = vpack.c.b16 %v409, %v408
    %v429 = vpack.c.b16 %v411, %v410
    %v430 = vpack.c.b16 %v413, %v412
    %v431 = vpack.c.b16 %v415, %v414
    %448 = vmatprep.subr.bf16.mxu0 0
    %449 = vmatpush1.bf16.msra.mxu0 %v416
    %450 = vmatprep.subr.bf16.mxu0 0
    %451 = vmatpush1.bf16.msra.mxu0 %v417
    %452 = vmatprep.subr.bf16.mxu0 0
    %453 = vmatpush1.bf16.msra.mxu0 %v418
    %454 = vmatprep.subr.bf16.mxu0 0
    %455 = vmatpush1.bf16.msra.mxu0 %v419
    %456 = vmatprep.subr.bf16.mxu0 0
    %457 = vmatpush1.bf16.msra.mxu0 %v420
    %458 = vmatprep.subr.bf16.mxu0 0
    %459 = vmatpush1.bf16.msra.mxu0 %v421
    %460 = vmatprep.subr.bf16.mxu0 0
    %461 = vmatpush1.bf16.msra.mxu0 %v422
    %462 = vmatprep.subr.bf16.mxu0 0
    %463 = vmatpush1.bf16.msra.mxu0 %v423
    %464 = vmatprep.subr.bf16.mxu0 0
    %465 = vmatpush1.bf16.msra.mxu0 %v424
    %466 = vmatprep.subr.bf16.mxu0 0
    %467 = vmatpush1.bf16.msra.mxu0 %v425
    %468 = vmatprep.subr.bf16.mxu0 0
    %469 = vmatpush1.bf16.msra.mxu0 %v426
    %470 = vmatprep.subr.bf16.mxu0 0
    %471 = vmatpush1.bf16.msra.mxu0 %v427
    %472 = vmatprep.subr.bf16.mxu0 0
    %473 = vmatpush1.bf16.msra.mxu0 %v428
    %474 = vmatprep.subr.bf16.mxu0 0
    %475 = vmatpush1.bf16.msra.mxu0 %v429
    %476 = vmatprep.subr.bf16.mxu0 0
    %477 = vmatpush1.bf16.msra.mxu0 %v430
    %478 = vmatprep.subr.bf16.mxu0 0
    %479 = vmatpush1.bf16.msra.mxu0 %v431
    %480 = vmatprep.mubr.bf16.mxu0 %v312
    %481 = vmatmul.mubr.bf16.gmra.mrb[0].mxu0 %v311
    %v482 = vpop.f32.mrb[0].mxu0
    %v483 = vadd.f32 %v350, %v482
    %v484 = vpop.f32.mrb[0].mxu0
    %v485 = vpop.f32.mrb[0].mxu0
    %v486 = vadd.f32 %v350, %v485
    %v487 = vpop.f32.mrb[0].mxu0
    %488 = vdwg.mxu0
    %v489 = vmax.f32 %v483, 0.0
    %v490 = vmax.f32 %v486, 0.0
    %v491 = vpack.c.bf16 %v490, %v489
    %v492 = vld [vmem:[#allocation11] sm:$0xf]
    %v493 = vld [vmem:[#allocation11 + $0x4] sm:$0xf]
    %v494 = vld [vmem:[#allocation11 + $0x8] sm:$0xf]
    %v495 = vld [vmem:[#allocation11 + $0xc] sm:$0xf]
    %v496 = vld [vmem:[#allocation11 + $0x10] sm:$0xf]
    %v497 = vld [vmem:[#allocation11 + $0x14] sm:$0xf]
    %v498 = vld [vmem:[#allocation11 + $0x18] sm:$0xf]
    %v499 = vld [vmem:[#allocation11 + $0x1c] sm:$0xf]
    %v500 = vld [vmem:[#allocation11 + $0x20] sm:$0xf]
    %v501 = vld [vmem:[#allocation11 + $0x24] sm:$0xf]
    %v502 = vld [vmem:[#allocation11 + $0x28] sm:$0xf]
    %v503 = vld [vmem:[#allocation11 + $0x2c] sm:$0xf]
    %v504 = vld [vmem:[#allocation11 + $0x30] sm:$0xf]
    %v505 = vld [vmem:[#allocation11 + $0x34] sm:$0xf]
    %v506 = vld [vmem:[#allocation11 + $0x38] sm:$0xf]
    %v507 = vld [vmem:[#allocation11 + $0x3c] sm:$0xf]
    %v508 = vld [vmem:[#allocation13] sm:$0x1]
    %v510 = vlaneseq
    %v511 = vshrl.u32 %v510, 7
    %v512 = vsub.s32 0, %v511
    %v513 = vrot.slane %v508, %v512
    %v531 = vunpack.c.l.b16 %v492
    %v532 = vunpack.c.l.b16 %v493
    %v533 = vunpack.c.l.b16 %v494
    %v534 = vunpack.c.l.b16 %v495
    %v535 = vunpack.c.l.b16 %v496
    %v536 = vunpack.c.l.b16 %v497
    %v537 = vunpack.c.l.b16 %v498
    %v538 = vunpack.c.l.b16 %v499
    %v539 = vunpack.c.l.b16 %v500
    %v540 = vunpack.c.l.b16 %v501
    %v541 = vunpack.c.l.b16 %v502
    %v542 = vunpack.c.l.b16 %v503
    %v543 = vunpack.c.l.b16 %v504
    %v544 = vunpack.c.l.b16 %v505
    %v545 = vunpack.c.l.b16 %v506
    %v546 = vunpack.c.l.b16 %v507
    %v547 = vpack.c.b16 %v532, %v531
    %v548 = vpack.c.b16 %v534, %v533
    %v549 = vpack.c.b16 %v536, %v535
    %v550 = vpack.c.b16 %v538, %v537
    %v551 = vpack.c.b16 %v540, %v539
    %v552 = vpack.c.b16 %v542, %v541
    %v553 = vpack.c.b16 %v544, %v543
    %v554 = vpack.c.b16 %v546, %v545
    %563 = vmatprep.subr.bf16.mxu0 0
    %564 = vmatpush1.bf16.msra.mxu0 %v547
    %565 = vmatprep.subr.bf16.mxu0 0
    %566 = vmatpush1.bf16.msra.mxu0 %v548
    %567 = vmatprep.subr.bf16.mxu0 0
    %568 = vmatpush1.bf16.msra.mxu0 %v549
    %569 = vmatprep.subr.bf16.mxu0 0
    %570 = vmatpush1.bf16.msra.mxu0 %v550
    %571 = vmatprep.subr.bf16.mxu0 0
    %572 = vmatpush1.bf16.msra.mxu0 %v551
    %573 = vmatprep.subr.bf16.mxu0 0
    %574 = vmatpush1.bf16.msra.mxu0 %v552
    %575 = vmatprep.subr.bf16.mxu0 0
    %576 = vmatpush1.bf16.msra.mxu0 %v553
    %577 = vmatprep.subr.bf16.mxu0 0
    %578 = vmatpush1.bf16.msra.mxu0 %v554
    %579 = vmatprep.subr.bf16.mxu0 0
    %580 = vmatpush1.bf16.msra.mxu0 0
    %581 = vmatprep.subr.bf16.mxu0 0
    %582 = vmatpush1.bf16.msra.mxu0 0
    %583 = vmatprep.subr.bf16.mxu0 0
    %584 = vmatpush1.bf16.msra.mxu0 0
    %585 = vmatprep.subr.bf16.mxu0 0
    %586 = vmatpush1.bf16.msra.mxu0 0
    %587 = vmatprep.subr.bf16.mxu0 0
    %588 = vmatpush1.bf16.msra.mxu0 0
    %589 = vmatprep.subr.bf16.mxu0 0
    %590 = vmatpush1.bf16.msra.mxu0 0
    %591 = vmatprep.subr.bf16.mxu0 0
    %592 = vmatpush1.bf16.msra.mxu0 0
    %593 = vmatprep.subr.bf16.mxu0 0
    %594 = vmatpush1.bf16.msra.mxu0 0
    %595 = vmatprep.mubr.bf16.mxu0 0
    %596 = vmatmul.mubr.bf16.gmra.mrb[0].mxu0 %v491
    %v597 = vpop.f32.mrb[0].mxu0
    %v598 = vadd.f32 %v513, %v597
    %v599 = vpop.f32.mrb[0].mxu0
    %v600 = vpop.f32.mrb[0].mxu0
    %v601 = vadd.f32 %v513, %v600
    %v602 = vpop.f32.mrb[0].mxu0
    %603 = vdwg.mxu0
    %v604 = vmax.f32 %v598, 0.0
    %v605 = vmax.f32 %v601, 0.0
    %v606 = vpack.c.bf16 %v605, %v604
    %v607 = vld [vmem:[#allocation14] sm:$0xff]
    %v608 = vld [vmem:[#allocation14 + $0x8] sm:$0xff]
    %v609 = vld [vmem:[#allocation14 + $0x10] sm:$0xff]
    %v610 = vld [vmem:[#allocation14 + $0x18] sm:$0xff]
    %v611 = vld [vmem:[#allocation14 + $0x20] sm:$0xff]
    %v612 = vld [vmem:[#allocation14 + $0x28] sm:$0xff]
    %v613 = vld [vmem:[#allocation14 + $0x30] sm:$0xff]
    %v614 = vld [vmem:[#allocation14 + $0x38] sm:$0xff]
    %v615 = vld [vmem:[#allocation14 + $0x40] sm:$0xff]
    %v616 = vld [vmem:[#allocation14 + $0x48] sm:$0xff]
    %v617 = vld [vmem:[#allocation14 + $0x50] sm:$0xff]
    %v618 = vld [vmem:[#allocation14 + $0x58] sm:$0xff]
    %v619 = vld [vmem:[#allocation14 + $0x60] sm:$0xff]
    %v620 = vld [vmem:[#allocation14 + $0x68] sm:$0xff]
    %v621 = vld [vmem:[#allocation14 + $0x70] sm:$0xff]
    %v622 = vld [vmem:[#allocation14 + $0x78] sm:$0xff]
    %v623 = vld [vmem:[#allocation16] sm:$0x3]
    %v625 = vlaneseq
    %v626 = vshrl.u32 %v625, 7
    %v627 = vsub.s32 0, %v626
    %v628 = vrot.slane %v623, %v627
    %v629 = vlaneseq
    %v630 = vshrl.u32 %v629, 7
    %v631 = vsub.s32 1, %v630
    %v632 = vrot.slane %v623, %v631
    %v651 = vunpack.c.l.b16 %v607
    %v652 = vunpack.c.h.b16 %v607
    %v653 = vunpack.c.l.b16 %v608
    %v654 = vunpack.c.h.b16 %v608
    %v655 = vunpack.c.l.b16 %v609
    %v656 = vunpack.c.h.b16 %v609
    %v657 = vunpack.c.l.b16 %v610
    %v658 = vunpack.c.h.b16 %v610
    %v659 = vunpack.c.l.b16 %v611
    %v660 = vunpack.c.h.b16 %v611
    %v661 = vunpack.c.l.b16 %v612
    %v662 = vunpack.c.h.b16 %v612
    %v663 = vunpack.c.l.b16 %v613
    %v664 = vunpack.c.h.b16 %v613
    %v665 = vunpack.c.l.b16 %v614
    %v666 = vunpack.c.h.b16 %v614
    %v667 = vunpack.c.l.b16 %v615
    %v668 = vunpack.c.h.b16 %v615
    %v669 = vunpack.c.l.b16 %v616
    %v670 = vunpack.c.h.b16 %v616
    %v671 = vunpack.c.l.b16 %v617
    %v672 = vunpack.c.h.b16 %v617
    %v673 = vunpack.c.l.b16 %v618
    %v674 = vunpack.c.h.b16 %v618
    %v675 = vunpack.c.l.b16 %v619
    %v676 = vunpack.c.h.b16 %v619
    %v677 = vunpack.c.l.b16 %v620
    %v678 = vunpack.c.h.b16 %v620
    %v679 = vunpack.c.l.b16 %v621
    %v680 = vunpack.c.h.b16 %v621
    %v681 = vunpack.c.l.b16 %v622
    %v682 = vunpack.c.h.b16 %v622
    %v683 = vpack.c.b16 %v653, %v651
    %v684 = vpack.c.b16 %v654, %v652
    %v685 = vpack.c.b16 %v657, %v655
    %v686 = vpack.c.b16 %v658, %v656
    %v687 = vpack.c.b16 %v661, %v659
    %v688 = vpack.c.b16 %v662, %v660
    %v689 = vpack.c.b16 %v665, %v663
    %v690 = vpack.c.b16 %v666, %v664
    %v691 = vpack.c.b16 %v669, %v667
    %v692 = vpack.c.b16 %v670, %v668
    %v693 = vpack.c.b16 %v673, %v671
    %v694 = vpack.c.b16 %v674, %v672
    %v695 = vpack.c.b16 %v677, %v675
    %v696 = vpack.c.b16 %v678, %v676
    %v697 = vpack.c.b16 %v681, %v679
    %v698 = vpack.c.b16 %v682, %v680
    %715 = vmatprep.subr.bf16.mxu0 %v684
    %716 = vmatpush1.bf16.msra.mxu0 %v683
    %717 = vmatprep.subr.bf16.mxu0 %v686
    %718 = vmatpush1.bf16.msra.mxu0 %v685
    %719 = vmatprep.subr.bf16.mxu0 %v688
    %720 = vmatpush1.bf16.msra.mxu0 %v687
    %721 = vmatprep.subr.bf16.mxu0 %v690
    %722 = vmatpush1.bf16.msra.mxu0 %v689
    %723 = vmatprep.subr.bf16.mxu0 %v692
    %724 = vmatpush1.bf16.msra.mxu0 %v691
    %725 = vmatprep.subr.bf16.mxu0 %v694
    %726 = vmatpush1.bf16.msra.mxu0 %v693
    %727 = vmatprep.subr.bf16.mxu0 %v696
    %728 = vmatpush1.bf16.msra.mxu0 %v695
    %729 = vmatprep.subr.bf16.mxu0 %v698
    %730 = vmatpush1.bf16.msra.mxu0 %v697
    %731 = vmatprep.subr.bf16.mxu0 0
    %732 = vmatpush1.bf16.msra.mxu0 0
    %733 = vmatprep.subr.bf16.mxu0 0
    %734 = vmatpush1.bf16.msra.mxu0 0
    %735 = vmatprep.subr.bf16.mxu0 0
    %736 = vmatpush1.bf16.msra.mxu0 0
    %737 = vmatprep.subr.bf16.mxu0 0
    %738 = vmatpush1.bf16.msra.mxu0 0
    %739 = vmatprep.subr.bf16.mxu0 0
    %740 = vmatpush1.bf16.msra.mxu0 0
    %741 = vmatprep.subr.bf16.mxu0 0
    %742 = vmatpush1.bf16.msra.mxu0 0
    %743 = vmatprep.subr.bf16.mxu0 0
    %744 = vmatpush1.bf16.msra.mxu0 0
    %745 = vmatprep.subr.bf16.mxu0 0
    %746 = vmatpush1.bf16.msra.mxu0 0
    %747 = vmatprep.mubr.bf16.mxu0 0
    %748 = vmatmul.mubr.bf16.gmra.mrb[0].mxu0 %v606
    %v749 = vpop.f32.mrb[0].mxu0
    %v750 = vadd.f32 %v628, %v749
    %v751 = vpop.f32.mrb[0].mxu0
    %v752 = vadd.f32 %v632, %v751
    %v753 = vpop.f32.mrb[0].mxu0
    %v754 = vadd.f32 %v628, %v753
    %v755 = vpop.f32.mrb[0].mxu0
    %v756 = vadd.f32 %v632, %v755
    %757 = vdwg.mxu0
    %v758 = vxor.u32 %v750, 2147483648
    %v759 = vxor.u32 %v752, 2147483648
    %v760 = vxor.u32 %v754, 2147483648
    %v761 = vxor.u32 %v756, 2147483648
    %v762 = vmul.f32 %v758, 1.442695
    %v763 = vpow.pop %v762
    %v764 = vmul.f32 %v759, 1.442695
    %v765 = vpow.pop %v764
    %v766 = vmul.f32 %v760, 1.442695
    %v767 = vpow.pop %v766
    %v768 = vmul.f32 %v761, 1.442695
    %v769 = vpow.pop %v768
    %v770 = vadd.f32 %v763, 1.0
    %v771 = vadd.f32 %v765, 1.0
    %v772 = vadd.f32 %v767, 1.0
    %v773 = vadd.f32 %v769, 1.0
    %v774 = vrcp.pop %v770
    %v775 = vmul.f32 1.0, %v774
    %v776 = vrcp.pop %v771
    %v777 = vmul.f32 1.0, %v776
    %v778 = vrcp.pop %v772
    %v779 = vmul.f32 1.0, %v778
    %v780 = vrcp.pop %v773
    %v781 = vmul.f32 1.0, %v780
    %782 = vst [vmem:[#allocation17] sm:$0xff] %v775
    %783 = vst [vmem:[#allocation17 + $0x8] sm:$0xff] %v777
    %784 = vst [vmem:[#allocation17 + $0x10] sm:$0xff] %v779
    %785 = vst [vmem:[#allocation17 + $0x18] sm:$0xff] %v781
    // Predicated region
    $region74: #{tpu_custom_call.1} parent=1 // pred_check
      _
    $region75: #{tpu_custom_call.1} parent=1 // pred_check_branch
      %787 = sbr.rel (0) target = $region77
    $region76: #{tpu_custom_call.1} parent=1 // pred_region
      %s789 = ssub.s32 512, 512
      %790 = vsyncadd [#allocation4], %s789
      %s791 = sshll.u32 [#allocation17], 4
      %s792 = int_to_ptr.vmem [resolvable:$true] %s791
      %797 = dma.vmem_to_hbm [thread:$0]  %s792, 512, %s9, [#allocation4], 256, 256, 16
    $region77: #{tpu_custom_call.1} parent=1 // pred_fallthru
      _
    // Predicated region
    $region78: #{tpu_custom_call.1} parent=1 // pred_check
      _
    $region79: #{tpu_custom_call.1} parent=1 // pred_check_branch
      %799 = sbr.rel (0) target = $region81
    $region80: #{tpu_custom_call.1} parent=1 // pred_region
      %800 = dma.done [#allocation4], 512
    $region81: #{tpu_custom_call.1} parent=1 // pred_fallthru
      _
    %801 = vsyncpa [#allocation3], 1
    %802 = vsyncpa [#allocation6], 1
    %803 = vsyncpa [#allocation9], 1
    %804 = vsyncpa [#allocation12], 1
    %805 = vsyncpa [#allocation15], 1
    %806 = vsyncpa [#allocation4], 1

</llo_original>
